<compile_context>
chip_gen: v6e
topology: v6e:2x2x1
jax: 0.10.0
libtpu: 0.0.40
codegen_flags: <defaults>
</compile_context>

<pallas_src>
import functools

import jax
import jax.numpy as jnp
from jax import lax
from jax.experimental import pallas as pl
from jax.experimental.pallas import tpu as pltpu


# ---------------------------------------------------------------------------
# Kernel: online argmin over K-chunks
# ---------------------------------------------------------------------------

def _vq_argmin_kernel(z_ref, cb_ref, cbsq_ref, idx_ref, best_s, best_i,
                      *, matmul_dtype=None):
    """One (row-tile, K-chunk) grid step.

    score[r, c] = z_r . code_c - 0.5*||code_c||^2
    argmax_c score == argmin_c ||z_r - code_c||^2  (||z||^2 dropped, 2x folded).
    The running (best_score, best_idx) accumulator lives in VMEM scratch and
    persists across the (innermost, "arbitrary") K-chunk grid axis.
    """
    kc = pl.program_id(1)

    @pl.when(kc == 0)
    def _():
        best_s[...] = jnp.full_like(best_s, -jnp.inf)
        best_i[...] = jnp.zeros_like(best_i)

    z = z_ref[...]                                   # (TN, D)
    cb = cb_ref[...]                                 # (Kblk, D)
    if matmul_dtype is not None:
        z = z.astype(matmul_dtype)
        cb = cb.astype(matmul_dtype)

    # z @ cb^T contracted on the last dim of both (no transpose), f32 accum.
    cross = lax.dot_general(
        z, cb, dimension_numbers=(((1,), (1,)), ((), ())),
        preferred_element_type=jnp.float32)          # (TN, Kblk) f32 (MXU)
    score = cross - cbsq_ref[...]                    # cbsq holds 0.5*||c||^2

    kblk = score.shape[1]
    chunk_max = jnp.max(score, axis=1, keepdims=True)              # (TN, 1)
    col = lax.broadcasted_iota(jnp.int32, score.shape, 1)
    # First-occurrence tie-break inside the chunk (matches torch.argmin).
    chunk_idx = jnp.min(jnp.where(score == chunk_max, col, kblk),
                        axis=1, keepdims=True) + kc * kblk         # (TN, 1)

    # Strictly-greater keeps the earliest chunk on cross-chunk ties.
    better = chunk_max > best_s[...]
    best_s[...] = jnp.where(better, chunk_max, best_s[...])
    best_i[...] = jnp.where(better, chunk_idx, best_i[...])

    @pl.when(kc == pl.num_programs(1) - 1)
    def _():
        idx_ref[...] = best_i[...]


# ---------------------------------------------------------------------------
# Pallas wrapper
# ---------------------------------------------------------------------------

def _vmem_capacity_bytes():
    try:
        return int(pltpu.get_tpu_info().vmem_capacity_bytes)
    except Exception:
        return 64 << 20  # conservative default (v7x per-TC VMEM)


def vq_indices_pallas(z_flat, codebook, *, tile_n=None, k_block=None,
                      matmul_dtype=None):
    """z_flat (N, D), codebook (K, D) -> int32 indices (N,) of nearest code."""
    n, d = z_flat.shape
    k, d2 = codebook.shape
    assert d == d2, "embedding dim mismatch"

    itemsize = jnp.dtype(z_flat.dtype).itemsize
    vmem_cap = _vmem_capacity_bytes()
    budget = int(0.85 * vmem_cap) // 2        # headroom for compiler temps

    # --- K chunking: bound (TN, Kblk) intermediates; keep K lane-aligned.
    k128 = pl.cdiv(k, 128) * 128
    if k_block is None:
        k_block = k128 if k128 <= 1024 else 512
    k_pad = pl.cdiv(k, k_block) * k_block
    grid_k = k_pad // k_block

    # --- Row tile: target ~2 MiB of z per tile, clamp [256, 4096] rows, then
    #     shrink while the per-step VMEM estimate exceeds the budget.
    if tile_n is None:
        tile_n = (2 << 20) // max(d * itemsize, 1)
        tile_n = max(256, min(4096, tile_n))
    tile_n = max(128, (tile_n // 128) * 128)

    def est(tn):
        return (2 * tn * d * itemsize          # z tile (double-buffered)
                + 2 * k_block * d * itemsize   # codebook chunk
                + 2 * k_block * 4              # 0.5*||c||^2 chunk
                + 2 * tn * 4                   # idx output
                + 2 * tn * 8                   # best_s / best_i scratch
                + 4 * tn * k_block * 4)        # (TN, Kblk) f32/i32 temporaries

    while tile_n > 256 and est(tile_n) > budget:
        tile_n -= 128

    # --- Fit the row grid: pad N at 128-row granularity (not tile_n) and keep
    #     the parallel axis even so v7x's two TensorCores get equal work.
    rows128 = pl.cdiv(n, 128)
    grid_n = pl.cdiv(rows128, tile_n // 128)
    if grid_n > 1 and grid_n % 2 == 1:
        grid_n += 1
    tile_n = pl.cdiv(rows128, grid_n) * 128
    n_pad = tile_n * grid_n

    if n_pad != n:
        z_flat = jnp.pad(z_flat, ((0, n_pad - n), (0, 0)))

    # Grid-invariant 0.5*||c||^2, computed once in f32 in the wrapper (the 2x
    # of the classic formula is folded in here, saving a VPU pass per tile).
    cb32 = codebook.astype(jnp.float32)
    cbsq_half = 0.5 * jnp.sum(cb32 * cb32, axis=1)       # (K,)
    if k_pad != k:
        codebook = jnp.pad(codebook, ((0, k_pad - k), (0, 0)))
        # Padded codes can never win the argmax (score becomes -inf).
        cbsq_half = jnp.pad(cbsq_half, (0, k_pad - k),
                            constant_values=jnp.inf)
    cbsq_half = cbsq_half[None, :]                        # (1, K_pad)

    vmem_limit = int(min(0.85 * vmem_cap, max(32 << 20, 2 * est(tile_n))))

    kernel = functools.partial(_vq_argmin_kernel, matmul_dtype=matmul_dtype)

    idx2d = pl.pallas_call(
        kernel,
        out_shape=jax.ShapeDtypeStruct((n_pad, 1), jnp.int32),
        grid_spec=pltpu.PrefetchScalarGridSpec(
            num_scalar_prefetch=0,
            grid=(grid_n, grid_k),
            in_specs=[
                pl.BlockSpec((tile_n, d), lambda i, kc: (i, 0)),
                pl.BlockSpec((k_block, d), lambda i, kc: (kc, 0)),
                pl.BlockSpec((1, k_block), lambda i, kc: (0, kc)),
            ],
            out_specs=pl.BlockSpec((tile_n, 1), lambda i, kc: (i, 0)),
            scratch_shapes=[
                pltpu.VMEM((tile_n, 1), jnp.float32),   # best_score
                pltpu.VMEM((tile_n, 1), jnp.int32),     # best_idx
            ],
        ),
        compiler_params=pltpu.CompilerParams(
            dimension_semantics=("parallel", "arbitrary"),
            vmem_limit_bytes=vmem_limit),
    )(z_flat, codebook, cbsq_half)

    return idx2d[:n, 0]


# ---------------------------------------------------------------------------
# Module-level forward (mirrors VectorQuantizer._quantize)
# ---------------------------------------------------------------------------

def vector_quantizer_forward(z_nchw, codebook, *, beta=0.25, flg_train=True,
                             matmul_dtype=None):
    """z_nchw: (B, C, H, W), codebook: (K, C).
    Returns (z_q (B, C, H, W), loss scalar, perplexity scalar)."""
    b, c, h, w = z_nchw.shape
    kk = codebook.shape[0]

    # permute(0, 2, 3, 1) -> NHWC, flatten to (N, D)
    z_nhwc = jnp.transpose(z_nchw, (0, 2, 3, 1))
    z_flat = z_nhwc.reshape(-1, c)

    idx = vq_indices_pallas(z_flat, codebook, matmul_dtype=matmul_dtype)

    # z_q gather stays in XLA: onehot @ codebook in-kernel would double the
    # MXU FLOPs of the score matmul; the gather is memory-bound and overlaps.
    zq_flat = jnp.take(codebook, idx, axis=0).astype(z_nhwc.dtype)
    z_q = zq_flat.reshape(z_nhwc.shape)

    if flg_train:
        loss = (jnp.mean((lax.stop_gradient(z_q) - z_nhwc) ** 2)
                + beta * jnp.mean((z_q - lax.stop_gradient(z_nhwc)) ** 2))
    else:
        loss = jnp.float32(0.0)

    # Straight-through estimator.
    z_q = z_nhwc + lax.stop_gradient(z_q - z_nhwc)

    # Perplexity from indices (tiny scatter-add == mean of one-hot rows).
    counts = jnp.zeros((kk,), jnp.float32).at[idx].add(1.0)
    e_mean = counts / idx.shape[0]
    perplexity = jnp.exp(-jnp.sum(e_mean * jnp.log(e_mean + 1e-10)))

    z_q = jnp.transpose(z_q, (0, 3, 1, 2))  # back to NCHW
    return z_q, loss, perplexity


# ---------------------------------------------------------------------------
# Self-test
# ---------------------------------------------------------------------------

if __name__ == "__main__":
    key = jax.random.PRNGKey(0)
    k1, k2, k3, k4, k5, k6 = jax.random.split(key, 6)
    BETA = 0.25

    def ref_dist(zf, cb):
        return (jnp.sum(zf ** 2, axis=1, keepdims=True)
                + jnp.sum(cb ** 2, axis=1) - 2.0 * zf @ cb.T)

    # --- Config 1: small dims (D=8, K=32) -> single row tile, single K chunk.
    B, C, H, W, K = 2, 8, 16, 16, 32
    z = jax.random.normal(k1, (B, C, H, W), dtype=jnp.float32)
    cb = jax.random.normal(k2, (K, C), dtype=jnp.float32)

    fwd = jax.jit(functools.partial(vector_quantizer_forward,
                                    beta=BETA, flg_train=True))
    z_q, loss, ppl = fwd(z, cb)
    jax.block_until_ready((z_q, loss, ppl))

    z_flat = jnp.transpose(z, (0, 2, 3, 1)).reshape(-1, C)
    idx = vq_indices_pallas(z_flat, cb)
    jax.block_until_ready(idx)
    d_ref = ref_dist(z_flat, cb)
    n_rows = z_flat.shape[0]
    # Optimality check (robust to FP near-ties).
    assert jnp.all(d_ref[jnp.arange(n_rows), idx]
                   <= jnp.min(d_ref, axis=1) + 1e-4), "argmin not optimal"
    zq_ref = jnp.transpose(jnp.take(cb, idx, axis=0).reshape(B, H, W, C),
                           (0, 3, 1, 2))
    assert z_q.shape == (B, C, H, W)
    assert jnp.allclose(z_q, zq_ref, atol=1e-5), "z_q mismatch (config 1)"
    counts = jnp.zeros((K,), jnp.float32).at[idx].add(1.0)
    e_mean = counts / n_rows
    ppl_ref = jnp.exp(-jnp.sum(e_mean * jnp.log(e_mean + 1e-10)))
    assert jnp.allclose(ppl, ppl_ref, rtol=1e-5), "perplexity mismatch"

    # --- Config 2: K=1280 -> K-chunked online argmin (Kblk=512, 3 chunks,
    #     last chunk lane-padded with +inf cbsq).
    B2, C2, H2, W2, K2 = 2, 32, 16, 16, 1280
    z2 = jax.random.normal(k3, (B2, C2, H2, W2), dtype=jnp.float32)
    cb2 = jax.random.normal(k4, (K2, C2), dtype=jnp.float32)
    fwd2 = jax.jit(functools.partial(vector_quantizer_forward,
                                     beta=BETA, flg_train=False))
    z_q2, loss2, ppl2 = fwd2(z2, cb2)
    jax.block_until_ready((z_q2, loss2, ppl2))
    z2_flat = jnp.transpose(z2, (0, 2, 3, 1)).reshape(-1, C2)
    idx2 = vq_indices_pallas(z2_flat, cb2)
    jax.block_until_ready(idx2)
    d2 = ref_dist(z2_flat, cb2)
    assert jnp.all(d2[jnp.arange(z2_flat.shape[0]), idx2]
                   <= jnp.min(d2, axis=1) + 1e-3), "argmin not optimal (K-chunk)"
    zq2_ref = jnp.transpose(jnp.take(cb2, idx2, axis=0).reshape(B2, H2, W2, C2),
                            (0, 3, 1, 2))
    assert jnp.allclose(z_q2, zq2_ref, atol=1e-4), "z_q mismatch (config 2)"

    # --- Config 3: force multiple row tiles + even-grid bump + row padding.
    N3, D3, K3 = 1280, 16, 64
    z3 = jax.random.normal(k5, (N3, D3), dtype=jnp.float32)
    cb3 = jax.random.normal(k6, (K3, D3), dtype=jnp.float32)
    idx3 = vq_indices_pallas(z3, cb3, tile_n=256)
    jax.block_until_ready(idx3)
    d3 = ref_dist(z3, cb3)
    assert idx3.shape == (N3,)
    assert jnp.all(d3[jnp.arange(N3), idx3]
                   <= jnp.min(d3, axis=1) + 1e-4), "argmin not optimal (tiled)"

    # --- bf16 smoke run (bf16 MXU matmul, f32 argmin math).
    out_b = jax.jit(functools.partial(vector_quantizer_forward,
                                      beta=BETA, flg_train=True))(
        z.astype(jnp.bfloat16), cb.astype(jnp.bfloat16))
    jax.block_until_ready(out_b)

    print("KERNEL_OK")
</pallas_src>

<mosaic_0001>
module attributes {stable_mosaic.version = 11 : i64} {
  func.func private @main(%arg0: i32) attributes {dimension_semantics = [#tpu.dimension_semantics<core_parallel>], iteration_bounds = array<i64: 2>, tpu.core_type = #tpu.core_type<sc_scalar_subcore>, window_params = []} {
    return
  }
}

module attributes {stable_mosaic.version = 11 : i64} {
  func.func private @main(%arg0: i32) attributes {dimension_semantics = [#tpu.dimension_semantics<core_parallel>], iteration_bounds = array<i64: 2>, tpu.core_type = #tpu.core_type<sc_scalar_subcore>, window_params = []} {
    return
  }
}

module attributes {stable_mosaic.version = 11 : i64} {
  func.func @_vq_argmin_kernel(%arg0: i32, %arg1: i32, %arg2: memref<512x8xf32, #tpu.memory_space<vmem>>, %arg3: memref<128x8xf32, #tpu.memory_space<vmem>>, %arg4: memref<1x128xf32, #tpu.memory_space<vmem>>, %arg5: memref<512x1xi32, #tpu.memory_space<vmem>>, %arg6: memref<512x1xf32, #tpu.memory_space<vmem>>, %arg7: memref<512x1xi32, #tpu.memory_space<vmem>>) attributes {dimension_semantics = [#tpu.dimension_semantics<parallel>, #tpu.dimension_semantics<arbitrary>], iteration_bounds = array<i64: 1, 1>, scalar_prefetch = 0 : i64, scratch_operands = 2 : i64, tpu.core_type = #tpu.core_type<tc>, window_params = [{transform_indices = @transform_0, window_bounds = array<i64: 512, 8>}, {transform_indices = @transform_1, window_bounds = array<i64: 128, 8>}, {transform_indices = @transform_2, window_bounds = array<i64: 1, 128>}, {transform_indices = @transform_3, window_bounds = array<i64: 512, 1>}]} {
    %c0_i32 = arith.constant 0 : i32
    %0 = arith.cmpi eq, %arg1, %c0_i32 : i32
    %1 = arith.extui %0 : i1 to i32
    %c0_i32_0 = arith.constant 0 : i32
    %2 = arith.cmpi ne, %1, %c0_i32_0 : i32
    scf.if %2 {
      %cst_21 = arith.constant 0xFF800000 : f32
      %32 = vector.broadcast %cst_21 : f32 to vector<512x1xf32>
      %c0_22 = arith.constant 0 : index
      %c0_23 = arith.constant 0 : index
      %33 = vector.load %arg6[%c0_22, %c0_23] : memref<512x1xf32, #tpu.memory_space<vmem>>, vector<512x1xf32>
      tpu.vector_store %arg6[%c0_22, %c0_23], %32 {strides = array<i32>} : memref<512x1xf32, #tpu.memory_space<vmem>>, vector<512x1xf32>,
      %c0_i32_24 = arith.constant 0 : i32
      %34 = vector.broadcast %c0_i32_24 : i32 to vector<512x1xi32>
      %c0_25 = arith.constant 0 : index
      %c0_26 = arith.constant 0 : index
      %35 = vector.load %arg7[%c0_25, %c0_26] : memref<512x1xi32, #tpu.memory_space<vmem>>, vector<512x1xi32>
      tpu.vector_store %arg7[%c0_25, %c0_26], %34 {strides = array<i32>} : memref<512x1xi32, #tpu.memory_space<vmem>>, vector<512x1xi32>,
    } else {
    }
    %c0 = arith.constant 0 : index
    %c0_1 = arith.constant 0 : index
    %3 = vector.load %arg2[%c0, %c0_1] : memref<512x8xf32, #tpu.memory_space<vmem>>, vector<512x8xf32>
    %c0_2 = arith.constant 0 : index
    %c0_3 = arith.constant 0 : index
    %4 = vector.load %arg3[%c0_2, %c0_3] : memref<128x8xf32, #tpu.memory_space<vmem>>, vector<128x8xf32>
    %cst = arith.constant dense<0.000000e+00> : vector<512x128xf32>
    %5 = tpu.matmul %3, %4, %cst {dimension_numbers = #tpu.dot_dimension_numbers<[1], [1], [0], [0], [0, 0, 1, 0], [], []>} : vector<512x8xf32>, vector<128x8xf32>, vector<512x128xf32> -> vector<512x128xf32>
    %c0_4 = arith.constant 0 : index
    %c0_5 = arith.constant 0 : index
    %6 = vector.load %arg4[%c0_4, %c0_5] : memref<1x128xf32, #tpu.memory_space<vmem>>, vector<1x128xf32>
    %7 = vector.broadcast %6 : vector<1x128xf32> to vector<512x128xf32>
    %8 = arith.subf %5, %7 : vector<512x128xf32>
    %cst_6 = arith.constant dense<0xFF800000> : vector<512xf32>
    %9 = vector.multi_reduction <maximumf>, %8, %cst_6 [1] : vector<512x128xf32> to vector<512xf32>
    %10 = vector.shape_cast %9 : vector<512xf32> to vector<512x1xf32>
    %11 = tpu.iota {dimensions = array<i32: 1>} : vector<512x128xi32>
    %12 = vector.broadcast %10 : vector<512x1xf32> to vector<512x128xf32>
    %13 = arith.cmpf oeq, %8, %12 : vector<512x128xf32>
    %c128_i32 = arith.constant 128 : i32
    %14 = vector.broadcast %c128_i32 : i32 to vector<512x128xi32>
    %15 = arith.select %13, %11, %14 : vector<512x128xi1>, vector<512x128xi32>
    %cst_7 = arith.constant dense<2147483647> : vector<512xi32>
    %16 = vector.multi_reduction <minsi>, %15, %cst_7 [1] : vector<512x128xi32> to vector<512xi32>
    %17 = vector.shape_cast %16 : vector<512xi32> to vector<512x1xi32>
    %c128_i32_8 = arith.constant 128 : i32
    %18 = arith.muli %arg1, %c128_i32_8 : i32
    %19 = vector.broadcast %18 : i32 to vector<512x1xi32>
    %20 = arith.addi %17, %19 : vector<512x1xi32>
    %c0_9 = arith.constant 0 : index
    %c0_10 = arith.constant 0 : index
    %21 = vector.load %arg6[%c0_9, %c0_10] : memref<512x1xf32, #tpu.memory_space<vmem>>, vector<512x1xf32>
    %22 = arith.cmpf ogt, %10, %21 : vector<512x1xf32>
    %c0_11 = arith.constant 0 : index
    %c0_12 = arith.constant 0 : index
    %23 = vector.load %arg6[%c0_11, %c0_12] : memref<512x1xf32, #tpu.memory_space<vmem>>, vector<512x1xf32>
    %24 = arith.select %22, %10, %23 : vector<512x1xi1>, vector<512x1xf32>
    %c0_13 = arith.constant 0 : index
    %c0_14 = arith.constant 0 : index
    %25 = vector.load %arg6[%c0_13, %c0_14] : memref<512x1xf32, #tpu.memory_space<vmem>>, vector<512x1xf32>
    tpu.vector_store %arg6[%c0_13, %c0_14], %24 {strides = array<i32>} : memref<512x1xf32, #tpu.memory_space<vmem>>, vector<512x1xf32>,
    %c0_15 = arith.constant 0 : index
    %c0_16 = arith.constant 0 : index
    %26 = vector.load %arg7[%c0_15, %c0_16] : memref<512x1xi32, #tpu.memory_space<vmem>>, vector<512x1xi32>
    %27 = arith.select %22, %20, %26 : vector<512x1xi1>, vector<512x1xi32>
    %c0_17 = arith.constant 0 : index
    %c0_18 = arith.constant 0 : index
    %28 = vector.load %arg7[%c0_17, %c0_18] : memref<512x1xi32, #tpu.memory_space<vmem>>, vector<512x1xi32>
    tpu.vector_store %arg7[%c0_17, %c0_18], %27 {strides = array<i32>} : memref<512x1xi32, #tpu.memory_space<vmem>>, vector<512x1xi32>,
    %c0_i32_19 = arith.constant 0 : i32
    %29 = arith.cmpi eq, %arg1, %c0_i32_19 : i32
    %30 = arith.extui %29 : i1 to i32
    %c0_i32_20 = arith.constant 0 : i32
    %31 = arith.cmpi ne, %30, %c0_i32_20 : i32
    scf.if %31 {
      %c0_21 = arith.constant 0 : index
      %c0_22 = arith.constant 0 : index
      %32 = vector.load %arg7[%c0_21, %c0_22] : memref<512x1xi32, #tpu.memory_space<vmem>>, vector<512x1xi32>
      %c0_23 = arith.constant 0 : index
      %c0_24 = arith.constant 0 : index
      %33 = vector.load %arg5[%c0_23, %c0_24] : memref<512x1xi32, #tpu.memory_space<vmem>>, vector<512x1xi32>
      tpu.vector_store %arg5[%c0_23, %c0_24], %32 {strides = array<i32>} : memref<512x1xi32, #tpu.memory_space<vmem>>, vector<512x1xi32>,
    } else {
    }
    return
  }
  func.func @transform_0(%arg0: i32, %arg1: i32) -> (i32, i32) {
    %c0_i32 = arith.constant 0 : i32
    %c0_i32_0 = arith.constant 0 : i32
    return %arg0, %c0_i32 : i32, i32
  }
  func.func @transform_1(%arg0: i32, %arg1: i32) -> (i32, i32) {
    %c0_i32 = arith.constant 0 : i32
    %c0_i32_0 = arith.constant 0 : i32
    return %arg1, %c0_i32 : i32, i32
  }
  func.func @transform_2(%arg0: i32, %arg1: i32) -> (i32, i32) {
    %c0_i32 = arith.constant 0 : i32
    %c0_i32_0 = arith.constant 0 : i32
    return %c0_i32, %arg1 : i32, i32
  }
  func.func @transform_3(%arg0: i32, %arg1: i32) -> (i32, i32) {
    %c0_i32 = arith.constant 0 : i32
    %c0_i32_0 = arith.constant 0 : i32
    return %arg0, %c0_i32 : i32, i32
  }
}

</mosaic_0001>

<llo_original>
// kernel: vector_quantizer_forward.1
$region0: #{vector_quantizer_forward.1}
  #allocation0 [shape = 'u32[]', space=smem, size = 0x4, offset = 0x4, fixed_abs, tag = 'smem constant byte address 0x4 - core index']
  #allocation1 [shape = 'u32[144,128]{1,0:T(1,128)}', space=vmem, size = 0x12000, scoped, tag = 'internal scratch']
  #allocation2 [shape = 'f32[512,1]{1,0:T(8,128)}', space=vmem, size = 0x40000, scoped, tag = 'scratch operand']
  #allocation3 [shape = 's32[512,1]{1,0:T(8,128)}', space=vmem, size = 0x40000, scoped, tag = 'scratch operand']
  %s0 = inlined_call_operand.vmem [shape: f32[512,8], index: 0, kind: input, shape index: {}]
  %s1 = inlined_call_operand.vmem [shape: f32[128,8], index: 1, kind: input, shape index: {}]
  %s2 = inlined_call_operand.vmem [shape: f32[1,128], index: 2, kind: input, shape index: {}]
  %s3 = inlined_call_operand.vmem [shape: s32[512,1], index: 3, kind: output, shape index: {}]
  %s4 = sld [smem:[#allocation0]]
  $region30: #{vector_quantizer_forward.1} parent=0
    _
  %s6 = ssub.s32 1, %s4
  %s7 = scalar_select 0, %s6, %s4
  // Predicated region
  $region2: #{vector_quantizer_forward.1} parent=0 // pred_check
    _
  $region3: #{vector_quantizer_forward.1} parent=0 // pred_check_branch
    %9 = sbr.rel (0) target = $region5
  $region4: #{vector_quantizer_forward.1} parent=0 // pred_region
    _
  $region5: #{vector_quantizer_forward.1} parent=0 // pred_fallthru
    _
  // Predicated region
  $region6: #{vector_quantizer_forward.1} parent=0 // pred_check
    _
  $region7: #{vector_quantizer_forward.1} parent=0 // pred_check_branch
    %11 = sbr.rel (0) target = $region9
  $region8: #{vector_quantizer_forward.1} parent=0 // pred_region
    _
  $region9: #{vector_quantizer_forward.1} parent=0 // pred_fallthru
    _
  // Predicated region
  $region10: #{vector_quantizer_forward.1} parent=0 // pred_check
    _
  $region11: #{vector_quantizer_forward.1} parent=0 // pred_check_branch
    %13 = sbr.rel (0) target = $region13
  $region12: #{vector_quantizer_forward.1} parent=0 // pred_region
    _
  $region13: #{vector_quantizer_forward.1} parent=0 // pred_fallthru
    _
  %p14 = scmp.eq.s32.totalorder 0, 0
  // Predicated region
  $region14: #{vector_quantizer_forward.1} parent=0 // pred_check
    %p15 = pneg %p14
  $region15: #{vector_quantizer_forward.1} parent=0 // pred_check_branch
    %17 = sbr.rel (%p15) target = $region17
  $region16: #{vector_quantizer_forward.1} parent=0 // pred_region
    %vm18 = vcmask 7168
    %19 = vst.msk [vmem:[#allocation2] sm:$0xff] %vm18, -inf
    %20 = vst.msk [vmem:[#allocation2 + $0x8] sm:$0xff] %vm18, -inf
    %21 = vst.msk [vmem:[#allocation2 + $0x10] sm:$0xff] %vm18, -inf
    %22 = vst.msk [vmem:[#allocation2 + $0x18] sm:$0xff] %vm18, -inf
    %23 = vst.msk [vmem:[#allocation2 + $0x20] sm:$0xff] %vm18, -inf
    %24 = vst.msk [vmem:[#allocation2 + $0x28] sm:$0xff] %vm18, -inf
    %25 = vst.msk [vmem:[#allocation2 + $0x30] sm:$0xff] %vm18, -inf
    %26 = vst.msk [vmem:[#allocation2 + $0x38] sm:$0xff] %vm18, -inf
    %27 = vst.msk [vmem:[#allocation2 + $0x40] sm:$0xff] %vm18, -inf
    %28 = vst.msk [vmem:[#allocation2 + $0x48] sm:$0xff] %vm18, -inf
    %29 = vst.msk [vmem:[#allocation2 + $0x50] sm:$0xff] %vm18, -inf
    %30 = vst.msk [vmem:[#allocation2 + $0x58] sm:$0xff] %vm18, -inf
    %31 = vst.msk [vmem:[#allocation2 + $0x60] sm:$0xff] %vm18, -inf
    %32 = vst.msk [vmem:[#allocation2 + $0x68] sm:$0xff] %vm18, -inf
    %33 = vst.msk [vmem:[#allocation2 + $0x70] sm:$0xff] %vm18, -inf
    %34 = vst.msk [vmem:[#allocation2 + $0x78] sm:$0xff] %vm18, -inf
    %35 = vst.msk [vmem:[#allocation2 + $0x80] sm:$0xff] %vm18, -inf
    %36 = vst.msk [vmem:[#allocation2 + $0x88] sm:$0xff] %vm18, -inf
    %37 = vst.msk [vmem:[#allocation2 + $0x90] sm:$0xff] %vm18, -inf
    %38 = vst.msk [vmem:[#allocation2 + $0x98] sm:$0xff] %vm18, -inf
    %39 = vst.msk [vmem:[#allocation2 + $0xa0] sm:$0xff] %vm18, -inf
    %40 = vst.msk [vmem:[#allocation2 + $0xa8] sm:$0xff] %vm18, -inf
    %41 = vst.msk [vmem:[#allocation2 + $0xb0] sm:$0xff] %vm18, -inf
    %42 = vst.msk [vmem:[#allocation2 + $0xb8] sm:$0xff] %vm18, -inf
    %43 = vst.msk [vmem:[#allocation2 + $0xc0] sm:$0xff] %vm18, -inf
    %44 = vst.msk [vmem:[#allocation2 + $0xc8] sm:$0xff] %vm18, -inf
    %45 = vst.msk [vmem:[#allocation2 + $0xd0] sm:$0xff] %vm18, -inf
    %46 = vst.msk [vmem:[#allocation2 + $0xd8] sm:$0xff] %vm18, -inf
    %47 = vst.msk [vmem:[#allocation2 + $0xe0] sm:$0xff] %vm18, -inf
    %48 = vst.msk [vmem:[#allocation2 + $0xe8] sm:$0xff] %vm18, -inf
    %49 = vst.msk [vmem:[#allocation2 + $0xf0] sm:$0xff] %vm18, -inf
    %50 = vst.msk [vmem:[#allocation2 + $0xf8] sm:$0xff] %vm18, -inf
    %51 = vst.msk [vmem:[#allocation2 + $0x100] sm:$0xff] %vm18, -inf
    %52 = vst.msk [vmem:[#allocation2 + $0x108] sm:$0xff] %vm18, -inf
    %53 = vst.msk [vmem:[#allocation2 + $0x110] sm:$0xff] %vm18, -inf
    %54 = vst.msk [vmem:[#allocation2 + $0x118] sm:$0xff] %vm18, -inf
    %55 = vst.msk [vmem:[#allocation2 + $0x120] sm:$0xff] %vm18, -inf
    %56 = vst.msk [vmem:[#allocation2 + $0x128] sm:$0xff] %vm18, -inf
    %57 = vst.msk [vmem:[#allocation2 + $0x130] sm:$0xff] %vm18, -inf
    %58 = vst.msk [vmem:[#allocation2 + $0x138] sm:$0xff] %vm18, -inf
    %59 = vst.msk [vmem:[#allocation2 + $0x140] sm:$0xff] %vm18, -inf
    %60 = vst.msk [vmem:[#allocation2 + $0x148] sm:$0xff] %vm18, -inf
    %61 = vst.msk [vmem:[#allocation2 + $0x150] sm:$0xff] %vm18, -inf
    %62 = vst.msk [vmem:[#allocation2 + $0x158] sm:$0xff] %vm18, -inf
    %63 = vst.msk [vmem:[#allocation2 + $0x160] sm:$0xff] %vm18, -inf
    %64 = vst.msk [vmem:[#allocation2 + $0x168] sm:$0xff] %vm18, -inf
    %65 = vst.msk [vmem:[#allocation2 + $0x170] sm:$0xff] %vm18, -inf
    %66 = vst.msk [vmem:[#allocation2 + $0x178] sm:$0xff] %vm18, -inf
    %67 = vst.msk [vmem:[#allocation2 + $0x180] sm:$0xff] %vm18, -inf
    %68 = vst.msk [vmem:[#allocation2 + $0x188] sm:$0xff] %vm18, -inf
    %69 = vst.msk [vmem:[#allocation2 + $0x190] sm:$0xff] %vm18, -inf
    %70 = vst.msk [vmem:[#allocation2 + $0x198] sm:$0xff] %vm18, -inf
    %71 = vst.msk [vmem:[#allocation2 + $0x1a0] sm:$0xff] %vm18, -inf
    %72 = vst.msk [vmem:[#allocation2 + $0x1a8] sm:$0xff] %vm18, -inf
    %73 = vst.msk [vmem:[#allocation2 + $0x1b0] sm:$0xff] %vm18, -inf
    %74 = vst.msk [vmem:[#allocation2 + $0x1b8] sm:$0xff] %vm18, -inf
    %75 = vst.msk [vmem:[#allocation2 + $0x1c0] sm:$0xff] %vm18, -inf
    %76 = vst.msk [vmem:[#allocation2 + $0x1c8] sm:$0xff] %vm18, -inf
    %77 = vst.msk [vmem:[#allocation2 + $0x1d0] sm:$0xff] %vm18, -inf
    %78 = vst.msk [vmem:[#allocation2 + $0x1d8] sm:$0xff] %vm18, -inf
    %79 = vst.msk [vmem:[#allocation2 + $0x1e0] sm:$0xff] %vm18, -inf
    %80 = vst.msk [vmem:[#allocation2 + $0x1e8] sm:$0xff] %vm18, -inf
    %81 = vst.msk [vmem:[#allocation2 + $0x1f0] sm:$0xff] %vm18, -inf
    %82 = vst.msk [vmem:[#allocation2 + $0x1f8] sm:$0xff] %vm18, -inf
    %83 = vst.msk [vmem:[#allocation3] sm:$0xff] %vm18, 0
    %84 = vst.msk [vmem:[#allocation3 + $0x8] sm:$0xff] %vm18, 0
    %85 = vst.msk [vmem:[#allocation3 + $0x10] sm:$0xff] %vm18, 0
    %86 = vst.msk [vmem:[#allocation3 + $0x18] sm:$0xff] %vm18, 0
    %87 = vst.msk [vmem:[#allocation3 + $0x20] sm:$0xff] %vm18, 0
    %88 = vst.msk [vmem:[#allocation3 + $0x28] sm:$0xff] %vm18, 0
    %89 = vst.msk [vmem:[#allocation3 + $0x30] sm:$0xff] %vm18, 0
    %90 = vst.msk [vmem:[#allocation3 + $0x38] sm:$0xff] %vm18, 0
    %91 = vst.msk [vmem:[#allocation3 + $0x40] sm:$0xff] %vm18, 0
    %92 = vst.msk [vmem:[#allocation3 + $0x48] sm:$0xff] %vm18, 0
    %93 = vst.msk [vmem:[#allocation3 + $0x50] sm:$0xff] %vm18, 0
    %94 = vst.msk [vmem:[#allocation3 + $0x58] sm:$0xff] %vm18, 0
    %95 = vst.msk [vmem:[#allocation3 + $0x60] sm:$0xff] %vm18, 0
    %96 = vst.msk [vmem:[#allocation3 + $0x68] sm:$0xff] %vm18, 0
    %97 = vst.msk [vmem:[#allocation3 + $0x70] sm:$0xff] %vm18, 0
    %98 = vst.msk [vmem:[#allocation3 + $0x78] sm:$0xff] %vm18, 0
    %99 = vst.msk [vmem:[#allocation3 + $0x80] sm:$0xff] %vm18, 0
    %100 = vst.msk [vmem:[#allocation3 + $0x88] sm:$0xff] %vm18, 0
    %101 = vst.msk [vmem:[#allocation3 + $0x90] sm:$0xff] %vm18, 0
    %102 = vst.msk [vmem:[#allocation3 + $0x98] sm:$0xff] %vm18, 0
    %103 = vst.msk [vmem:[#allocation3 + $0xa0] sm:$0xff] %vm18, 0
    %104 = vst.msk [vmem:[#allocation3 + $0xa8] sm:$0xff] %vm18, 0
    %105 = vst.msk [vmem:[#allocation3 + $0xb0] sm:$0xff] %vm18, 0
    %106 = vst.msk [vmem:[#allocation3 + $0xb8] sm:$0xff] %vm18, 0
    %107 = vst.msk [vmem:[#allocation3 + $0xc0] sm:$0xff] %vm18, 0
    %108 = vst.msk [vmem:[#allocation3 + $0xc8] sm:$0xff] %vm18, 0
    %109 = vst.msk [vmem:[#allocation3 + $0xd0] sm:$0xff] %vm18, 0
    %110 = vst.msk [vmem:[#allocation3 + $0xd8] sm:$0xff] %vm18, 0
    %111 = vst.msk [vmem:[#allocation3 + $0xe0] sm:$0xff] %vm18, 0
    %112 = vst.msk [vmem:[#allocation3 + $0xe8] sm:$0xff] %vm18, 0
    %113 = vst.msk [vmem:[#allocation3 + $0xf0] sm:$0xff] %vm18, 0
    %114 = vst.msk [vmem:[#allocation3 + $0xf8] sm:$0xff] %vm18, 0
    %115 = vst.msk [vmem:[#allocation3 + $0x100] sm:$0xff] %vm18, 0
    %116 = vst.msk [vmem:[#allocation3 + $0x108] sm:$0xff] %vm18, 0
    %117 = vst.msk [vmem:[#allocation3 + $0x110] sm:$0xff] %vm18, 0
    %118 = vst.msk [vmem:[#allocation3 + $0x118] sm:$0xff] %vm18, 0
    %119 = vst.msk [vmem:[#allocation3 + $0x120] sm:$0xff] %vm18, 0
    %120 = vst.msk [vmem:[#allocation3 + $0x128] sm:$0xff] %vm18, 0
    %121 = vst.msk [vmem:[#allocation3 + $0x130] sm:$0xff] %vm18, 0
    %122 = vst.msk [vmem:[#allocation3 + $0x138] sm:$0xff] %vm18, 0
    %123 = vst.msk [vmem:[#allocation3 + $0x140] sm:$0xff] %vm18, 0
    %124 = vst.msk [vmem:[#allocation3 + $0x148] sm:$0xff] %vm18, 0
    %125 = vst.msk [vmem:[#allocation3 + $0x150] sm:$0xff] %vm18, 0
    %126 = vst.msk [vmem:[#allocation3 + $0x158] sm:$0xff] %vm18, 0
    %127 = vst.msk [vmem:[#allocation3 + $0x160] sm:$0xff] %vm18, 0
    %128 = vst.msk [vmem:[#allocation3 + $0x168] sm:$0xff] %vm18, 0
    %129 = vst.msk [vmem:[#allocation3 + $0x170] sm:$0xff] %vm18, 0
    %130 = vst.msk [vmem:[#allocation3 + $0x178] sm:$0xff] %vm18, 0
    %131 = vst.msk [vmem:[#allocation3 + $0x180] sm:$0xff] %vm18, 0
    %132 = vst.msk [vmem:[#allocation3 + $0x188] sm:$0xff] %vm18, 0
    %133 = vst.msk [vmem:[#allocation3 + $0x190] sm:$0xff] %vm18, 0
    %134 = vst.msk [vmem:[#allocation3 + $0x198] sm:$0xff] %vm18, 0
    %135 = vst.msk [vmem:[#allocation3 + $0x1a0] sm:$0xff] %vm18, 0
    %136 = vst.msk [vmem:[#allocation3 + $0x1a8] sm:$0xff] %vm18, 0
    %137 = vst.msk [vmem:[#allocation3 + $0x1b0] sm:$0xff] %vm18, 0
    %138 = vst.msk [vmem:[#allocation3 + $0x1b8] sm:$0xff] %vm18, 0
    %139 = vst.msk [vmem:[#allocation3 + $0x1c0] sm:$0xff] %vm18, 0
    %140 = vst.msk [vmem:[#allocation3 + $0x1c8] sm:$0xff] %vm18, 0
    %141 = vst.msk [vmem:[#allocation3 + $0x1d0] sm:$0xff] %vm18, 0
    %142 = vst.msk [vmem:[#allocation3 + $0x1d8] sm:$0xff] %vm18, 0
    %143 = vst.msk [vmem:[#allocation3 + $0x1e0] sm:$0xff] %vm18, 0
    %144 = vst.msk [vmem:[#allocation3 + $0x1e8] sm:$0xff] %vm18, 0
    %145 = vst.msk [vmem:[#allocation3 + $0x1f0] sm:$0xff] %vm18, 0
    %146 = vst.msk [vmem:[#allocation3 + $0x1f8] sm:$0xff] %vm18, 0
  $region17: #{vector_quantizer_forward.1} parent=0 // pred_fallthru
    _
  %v147 = vld [vmem:[%s0] sm:$0xff]
  %v148 = vld [vmem:[%s0 + $0x8] sm:$0xff]
  %v149 = vld [vmem:[%s0 + $0x10] sm:$0xff]
  %v150 = vld [vmem:[%s0 + $0x18] sm:$0xff]
  %v151 = vld [vmem:[%s0 + $0x20] sm:$0xff]
  %v152 = vld [vmem:[%s0 + $0x28] sm:$0xff]
  %v153 = vld [vmem:[%s0 + $0x30] sm:$0xff]
  %v154 = vld [vmem:[%s0 + $0x38] sm:$0xff]
  %v155 = vld [vmem:[%s0 + $0x40] sm:$0xff]
  %v156 = vld [vmem:[%s0 + $0x48] sm:$0xff]
  %v157 = vld [vmem:[%s0 + $0x50] sm:$0xff]
  %v158 = vld [vmem:[%s0 + $0x58] sm:$0xff]
  %v159 = vld [vmem:[%s0 + $0x60] sm:$0xff]
  %v160 = vld [vmem:[%s0 + $0x68] sm:$0xff]
  %v161 = vld [vmem:[%s0 + $0x70] sm:$0xff]
  %v162 = vld [vmem:[%s0 + $0x78] sm:$0xff]
  %v163 = vld [vmem:[%s0 + $0x80] sm:$0xff]
  %v164 = vld [vmem:[%s0 + $0x88] sm:$0xff]
  %v165 = vld [vmem:[%s0 + $0x90] sm:$0xff]
  %v166 = vld [vmem:[%s0 + $0x98] sm:$0xff]
  %v167 = vld [vmem:[%s0 + $0xa0] sm:$0xff]
  %v168 = vld [vmem:[%s0 + $0xa8] sm:$0xff]
  %v169 = vld [vmem:[%s0 + $0xb0] sm:$0xff]
  %v170 = vld [vmem:[%s0 + $0xb8] sm:$0xff]
  %v171 = vld [vmem:[%s0 + $0xc0] sm:$0xff]
  %v172 = vld [vmem:[%s0 + $0xc8] sm:$0xff]
  %v173 = vld [vmem:[%s0 + $0xd0] sm:$0xff]
  %v174 = vld [vmem:[%s0 + $0xd8] sm:$0xff]
  %v175 = vld [vmem:[%s0 + $0xe0] sm:$0xff]
  %v176 = vld [vmem:[%s0 + $0xe8] sm:$0xff]
  %v177 = vld [vmem:[%s0 + $0xf0] sm:$0xff]
  %v178 = vld [vmem:[%s0 + $0xf8] sm:$0xff]
  %v179 = vld [vmem:[%s0 + $0x100] sm:$0xff]
  %v180 = vld [vmem:[%s0 + $0x108] sm:$0xff]
  %v181 = vld [vmem:[%s0 + $0x110] sm:$0xff]
  %v182 = vld [vmem:[%s0 + $0x118] sm:$0xff]
  %v183 = vld [vmem:[%s0 + $0x120] sm:$0xff]
  %v184 = vld [vmem:[%s0 + $0x128] sm:$0xff]
  %v185 = vld [vmem:[%s0 + $0x130] sm:$0xff]
  %v186 = vld [vmem:[%s0 + $0x138] sm:$0xff]
  %v187 = vld [vmem:[%s0 + $0x140] sm:$0xff]
  %v188 = vld [vmem:[%s0 + $0x148] sm:$0xff]
  %v189 = vld [vmem:[%s0 + $0x150] sm:$0xff]
  %v190 = vld [vmem:[%s0 + $0x158] sm:$0xff]
  %v191 = vld [vmem:[%s0 + $0x160] sm:$0xff]
  %v192 = vld [vmem:[%s0 + $0x168] sm:$0xff]
  %v193 = vld [vmem:[%s0 + $0x170] sm:$0xff]
  %v194 = vld [vmem:[%s0 + $0x178] sm:$0xff]
  %v195 = vld [vmem:[%s0 + $0x180] sm:$0xff]
  %v196 = vld [vmem:[%s0 + $0x188] sm:$0xff]
  %v197 = vld [vmem:[%s0 + $0x190] sm:$0xff]
  %v198 = vld [vmem:[%s0 + $0x198] sm:$0xff]
  %v199 = vld [vmem:[%s0 + $0x1a0] sm:$0xff]
  %v200 = vld [vmem:[%s0 + $0x1a8] sm:$0xff]
  %v201 = vld [vmem:[%s0 + $0x1b0] sm:$0xff]
  %v202 = vld [vmem:[%s0 + $0x1b8] sm:$0xff]
  %v203 = vld [vmem:[%s0 + $0x1c0] sm:$0xff]
  %v204 = vld [vmem:[%s0 + $0x1c8] sm:$0xff]
  %v205 = vld [vmem:[%s0 + $0x1d0] sm:$0xff]
  %v206 = vld [vmem:[%s0 + $0x1d8] sm:$0xff]
  %v207 = vld [vmem:[%s0 + $0x1e0] sm:$0xff]
  %v208 = vld [vmem:[%s0 + $0x1e8] sm:$0xff]
  %v209 = vld [vmem:[%s0 + $0x1f0] sm:$0xff]
  %v210 = vld [vmem:[%s0 + $0x1f8] sm:$0xff]
  %v211 = vld [vmem:[%s1] sm:$0xff]
  %v212 = vld [vmem:[%s1 + $0x8] sm:$0xff]
  %v213 = vld [vmem:[%s1 + $0x10] sm:$0xff]
  %v214 = vld [vmem:[%s1 + $0x18] sm:$0xff]
  %v215 = vld [vmem:[%s1 + $0x20] sm:$0xff]
  %v216 = vld [vmem:[%s1 + $0x28] sm:$0xff]
  %v217 = vld [vmem:[%s1 + $0x30] sm:$0xff]
  %v218 = vld [vmem:[%s1 + $0x38] sm:$0xff]
  %v219 = vld [vmem:[%s1 + $0x40] sm:$0xff]
  %v220 = vld [vmem:[%s1 + $0x48] sm:$0xff]
  %v221 = vld [vmem:[%s1 + $0x50] sm:$0xff]
  %v222 = vld [vmem:[%s1 + $0x58] sm:$0xff]
  %v223 = vld [vmem:[%s1 + $0x60] sm:$0xff]
  %v224 = vld [vmem:[%s1 + $0x68] sm:$0xff]
  %v225 = vld [vmem:[%s1 + $0x70] sm:$0xff]
  %v226 = vld [vmem:[%s1 + $0x78] sm:$0xff]
  %vm227 = vcmask 64512
  %v229 = vsel %vm227, %v147, 0
  %v232 = vsel %vm227, %v148, 0
  %v235 = vsel %vm227, %v149, 0
  %v238 = vsel %vm227, %v150, 0
  %v241 = vsel %vm227, %v151, 0
  %v244 = vsel %vm227, %v152, 0
  %v247 = vsel %vm227, %v153, 0
  %v250 = vsel %vm227, %v154, 0
  %v253 = vsel %vm227, %v155, 0
  %v256 = vsel %vm227, %v156, 0
  %v259 = vsel %vm227, %v157, 0
  %v262 = vsel %vm227, %v158, 0
  %v265 = vsel %vm227, %v159, 0
  %v268 = vsel %vm227, %v160, 0
  %v271 = vsel %vm227, %v161, 0
  %v274 = vsel %vm227, %v162, 0
  %v277 = vsel %vm227, %v163, 0
  %v280 = vsel %vm227, %v164, 0
  %v283 = vsel %vm227, %v165, 0
  %v286 = vsel %vm227, %v166, 0
  %v289 = vsel %vm227, %v167, 0
  %v292 = vsel %vm227, %v168, 0
  %v295 = vsel %vm227, %v169, 0
  %v298 = vsel %vm227, %v170, 0
  %v301 = vsel %vm227, %v171, 0
  %v304 = vsel %vm227, %v172, 0
  %v307 = vsel %vm227, %v173, 0
  %v310 = vsel %vm227, %v174, 0
  %v313 = vsel %vm227, %v175, 0
  %v316 = vsel %vm227, %v176, 0
  %v319 = vsel %vm227, %v177, 0
  %v322 = vsel %vm227, %v178, 0
  %v325 = vsel %vm227, %v179, 0
  %v328 = vsel %vm227, %v180, 0
  %v331 = vsel %vm227, %v181, 0
  %v334 = vsel %vm227, %v182, 0
  %v337 = vsel %vm227, %v183, 0
  %v340 = vsel %vm227, %v184, 0
  %v343 = vsel %vm227, %v185, 0
  %v346 = vsel %vm227, %v186, 0
  %v349 = vsel %vm227, %v187, 0
  %v352 = vsel %vm227, %v188, 0
  %v355 = vsel %vm227, %v189, 0
  %v358 = vsel %vm227, %v190, 0
  %v361 = vsel %vm227, %v191, 0
  %v364 = vsel %vm227, %v192, 0
  %v367 = vsel %vm227, %v193, 0
  %v370 = vsel %vm227, %v194, 0
  %v373 = vsel %vm227, %v195, 0
  %v376 = vsel %vm227, %v196, 0
  %v379 = vsel %vm227, %v197, 0
  %v382 = vsel %vm227, %v198, 0
  %v385 = vsel %vm227, %v199, 0
  %v388 = vsel %vm227, %v200, 0
  %v391 = vsel %vm227, %v201, 0
  %v394 = vsel %vm227, %v202, 0
  %v397 = vsel %vm227, %v203, 0
  %v400 = vsel %vm227, %v204, 0
  %v403 = vsel %vm227, %v205, 0
  %v406 = vsel %vm227, %v206, 0
  %v409 = vsel %vm227, %v207, 0
  %v412 = vsel %vm227, %v208, 0
  %v415 = vsel %vm227, %v209, 0
  %v418 = vsel %vm227, %v210, 0
  %v421 = vsel %vm227, %v211, 0
  %v424 = vsel %vm227, %v212, 0
  %v427 = vsel %vm227, %v213, 0
  %v430 = vsel %vm227, %v214, 0
  %v433 = vsel %vm227, %v215, 0
  %v436 = vsel %vm227, %v216, 0
  %v439 = vsel %vm227, %v217, 0
  %v442 = vsel %vm227, %v218, 0
  %v445 = vsel %vm227, %v219, 0
  %v448 = vsel %vm227, %v220, 0
  %v451 = vsel %vm227, %v221, 0
  %v454 = vsel %vm227, %v222, 0
  %v457 = vsel %vm227, %v223, 0
  %v460 = vsel %vm227, %v224, 0
  %v463 = vsel %vm227, %v225, 0
  %v466 = vsel %vm227, %v226, 0
  %468 = vmatprep.subr.mxu0 0.0
  %469 = vmatpush1.xpose.msra.mxu0 %v466
  %470 = vmatprep.subr.mxu0 0.0
  %471 = vmatpush1.xpose.msra.mxu0 %v463
  %472 = vmatprep.subr.mxu0 0.0
  %473 = vmatpush1.xpose.msra.mxu0 %v460
  %474 = vmatprep.subr.mxu0 0.0
  %475 = vmatpush1.xpose.msra.mxu0 %v457
  %476 = vmatprep.subr.mxu0 0.0
  %477 = vmatpush1.xpose.msra.mxu0 %v454
  %478 = vmatprep.subr.mxu0 0.0
  %479 = vmatpush1.xpose.msra.mxu0 %v451
  %480 = vmatprep.subr.mxu0 0.0
  %481 = vmatpush1.xpose.msra.mxu0 %v448
  %482 = vmatprep.subr.mxu0 0.0
  %483 = vmatpush1.xpose.msra.mxu0 %v445
  %484 = vmatprep.subr.mxu0 0.0
  %485 = vmatpush1.xpose.msra.mxu0 %v442
  %486 = vmatprep.subr.mxu0 0.0
  %487 = vmatpush1.xpose.msra.mxu0 %v439
  %488 = vmatprep.subr.mxu0 0.0
  %489 = vmatpush1.xpose.msra.mxu0 %v436
  %490 = vmatprep.subr.mxu0 0.0
  %491 = vmatpush1.xpose.msra.mxu0 %v433
  %492 = vmatprep.subr.mxu0 0.0
  %493 = vmatpush1.xpose.msra.mxu0 %v430
  %494 = vmatprep.subr.mxu0 0.0
  %495 = vmatpush1.xpose.msra.mxu0 %v427
  %496 = vmatprep.subr.mxu0 0.0
  %497 = vmatpush1.xpose.msra.mxu0 %v424
  %498 = vmatprep.subr.mxu0 0.0
  %499 = vmatpush1.xpose.msra.mxu0 %v421
  %500 = vmatprep.subr.mxu0 0.0
  %501 = vmatpush2.xpose.msra.mxu0 0.0
  %502 = vmatprep.subr.mxu0 0.0
  %503 = vmatpush2.xpose.msra.mxu0 0.0
  %504 = vmatprep.subr.mxu0 0.0
  %505 = vmatpush2.xpose.msra.mxu0 0.0
  %506 = vmatprep.subr.mxu0 0.0
  %507 = vmatpush2.xpose.msra.mxu0 0.0
  %508 = vmatprep.subr.mxu0 0.0
  %509 = vmatpush2.xpose.msra.mxu0 0.0
  %510 = vmatprep.subr.mxu0 0.0
  %511 = vmatpush2.xpose.msra.mxu0 0.0
  %512 = vmatprep.subr.mxu0 0.0
  %513 = vmatpush2.xpose.msra.mxu0 0.0
  %514 = vmatprep.subr.mxu0 0.0
  %515 = vmatpush2.xpose.msra.mxu0 0.0
  %516 = vmatprep.subr.mxu0 0.0
  %517 = vmatpush2.xpose.msra.mxu0 0.0
  %518 = vmatprep.subr.mxu0 0.0
  %519 = vmatpush2.xpose.msra.mxu0 0.0
  %520 = vmatprep.subr.mxu0 0.0
  %521 = vmatpush2.xpose.msra.mxu0 0.0
  %522 = vmatprep.subr.mxu0 0.0
  %523 = vmatpush2.xpose.msra.mxu0 0.0
  %524 = vmatprep.subr.mxu0 0.0
  %525 = vmatpush2.xpose.msra.mxu0 0.0
  %526 = vmatprep.subr.mxu0 0.0
  %527 = vmatpush2.xpose.msra.mxu0 0.0
  %528 = vmatprep.subr.mxu0 0.0
  %529 = vmatpush2.xpose.msra.mxu0 0.0
  %530 = vmatprep.subr.mxu0 0.0
  %531 = vmatpush2.xpose.msra.mxu0 0.0
  %532 = vmatprep.mubr.f32.mxu0 0.0
  %533 = vmatmul.mubr.f32.gmra.mxu0 %v229
  %v534 = vpop.f32.mrf.mxu0
  %v535 = vadd.f32 0.0, %v534
  %v536 = vpop.f32.mrf.mxu0
  %537 = vmatprep.mubr.f32.mxu0 0.0
  %538 = vmatmul.mubr.f32.gmra.mxu0 %v232
  %v539 = vpop.f32.mrf.mxu0
  %v540 = vadd.f32 0.0, %v539
  %v541 = vpop.f32.mrf.mxu0
  %542 = vmatprep.mubr.f32.mxu0 0.0
  %543 = vmatmul.mubr.f32.gmra.mxu0 %v235
  %v544 = vpop.f32.mrf.mxu0
  %v545 = vadd.f32 0.0, %v544
  %v546 = vpop.f32.mrf.mxu0
  %547 = vmatprep.mubr.f32.mxu0 0.0
  %548 = vmatmul.mubr.f32.gmra.mxu0 %v238
  %v549 = vpop.f32.mrf.mxu0
  %v550 = vadd.f32 0.0, %v549
  %v551 = vpop.f32.mrf.mxu0
  %552 = vmatprep.mubr.f32.mxu0 0.0
  %553 = vmatmul.mubr.f32.gmra.mxu0 %v241
  %v554 = vpop.f32.mrf.mxu0
  %v555 = vadd.f32 0.0, %v554
  %v556 = vpop.f32.mrf.mxu0
  %557 = vmatprep.mubr.f32.mxu0 0.0
  %558 = vmatmul.mubr.f32.gmra.mxu0 %v244
  %v559 = vpop.f32.mrf.mxu0
  %v560 = vadd.f32 0.0, %v559
  %v561 = vpop.f32.mrf.mxu0
  %562 = vmatprep.mubr.f32.mxu0 0.0
  %563 = vmatmul.mubr.f32.gmra.mxu0 %v247
  %v564 = vpop.f32.mrf.mxu0
  %v565 = vadd.f32 0.0, %v564
  %v566 = vpop.f32.mrf.mxu0
  %567 = vmatprep.mubr.f32.mxu0 0.0
  %568 = vmatmul.mubr.f32.gmra.mxu0 %v250
  %v569 = vpop.f32.mrf.mxu0
  %v570 = vadd.f32 0.0, %v569
  %v571 = vpop.f32.mrf.mxu0
  %572 = vmatprep.mubr.f32.mxu0 0.0
  %573 = vmatmul.mubr.f32.gmra.mxu0 %v253
  %v574 = vpop.f32.mrf.mxu0
  %v575 = vadd.f32 0.0, %v574
  %v576 = vpop.f32.mrf.mxu0
  %577 = vmatprep.mubr.f32.mxu0 0.0
  %578 = vmatmul.mubr.f32.gmra.mxu0 %v256
  %v579 = vpop.f32.mrf.mxu0
  %v580 = vadd.f32 0.0, %v579
  %v581 = vpop.f32.mrf.mxu0
  %582 = vmatprep.mubr.f32.mxu0 0.0
  %583 = vmatmul.mubr.f32.gmra.mxu0 %v259
  %v584 = vpop.f32.mrf.mxu0
  %v585 = vadd.f32 0.0, %v584
  %v586 = vpop.f32.mrf.mxu0
  %587 = vmatprep.mubr.f32.mxu0 0.0
  %588 = vmatmul.mubr.f32.gmra.mxu0 %v262
  %v589 = vpop.f32.mrf.mxu0
  %v590 = vadd.f32 0.0, %v589
  %v591 = vpop.f32.mrf.mxu0
  %592 = vmatprep.mubr.f32.mxu0 0.0
  %593 = vmatmul.mubr.f32.gmra.mxu0 %v265
  %v594 = vpop.f32.mrf.mxu0
  %v595 = vadd.f32 0.0, %v594
  %v596 = vpop.f32.mrf.mxu0
  %597 = vmatprep.mubr.f32.mxu0 0.0
  %598 = vmatmul.mubr.f32.gmra.mxu0 %v268
  %v599 = vpop.f32.mrf.mxu0
  %v600 = vadd.f32 0.0, %v599
  %v601 = vpop.f32.mrf.mxu0
  %602 = vmatprep.mubr.f32.mxu0 0.0
  %603 = vmatmul.mubr.f32.gmra.mxu0 %v271
  %v604 = vpop.f32.mrf.mxu0
  %v605 = vadd.f32 0.0, %v604
  %v606 = vpop.f32.mrf.mxu0
  %607 = vmatprep.mubr.f32.mxu0 0.0
  %608 = vmatmul.mubr.f32.gmra.mxu0 %v274
  %v609 = vpop.f32.mrf.mxu0
  %v610 = vadd.f32 0.0, %v609
  %v611 = vpop.f32.mrf.mxu0
  %612 = vmatprep.mubr.f32.mxu0 0.0
  %613 = vmatmul.mubr.f32.gmra.mxu0 %v277
  %v614 = vpop.f32.mrf.mxu0
  %v615 = vadd.f32 0.0, %v614
  %v616 = vpop.f32.mrf.mxu0
  %617 = vmatprep.mubr.f32.mxu0 0.0
  %618 = vmatmul.mubr.f32.gmra.mxu0 %v280
  %v619 = vpop.f32.mrf.mxu0
  %v620 = vadd.f32 0.0, %v619
  %v621 = vpop.f32.mrf.mxu0
  %622 = vmatprep.mubr.f32.mxu0 0.0
  %623 = vmatmul.mubr.f32.gmra.mxu0 %v283
  %v624 = vpop.f32.mrf.mxu0
  %v625 = vadd.f32 0.0, %v624
  %v626 = vpop.f32.mrf.mxu0
  %627 = vmatprep.mubr.f32.mxu0 0.0
  %628 = vmatmul.mubr.f32.gmra.mxu0 %v286
  %v629 = vpop.f32.mrf.mxu0
  %v630 = vadd.f32 0.0, %v629
  %v631 = vpop.f32.mrf.mxu0
  %632 = vmatprep.mubr.f32.mxu0 0.0
  %633 = vmatmul.mubr.f32.gmra.mxu0 %v289
  %v634 = vpop.f32.mrf.mxu0
  %v635 = vadd.f32 0.0, %v634
  %v636 = vpop.f32.mrf.mxu0
  %637 = vmatprep.mubr.f32.mxu0 0.0
  %638 = vmatmul.mubr.f32.gmra.mxu0 %v292
  %v639 = vpop.f32.mrf.mxu0
  %v640 = vadd.f32 0.0, %v639
  %v641 = vpop.f32.mrf.mxu0
  %642 = vmatprep.mubr.f32.mxu0 0.0
  %643 = vmatmul.mubr.f32.gmra.mxu0 %v295
  %v644 = vpop.f32.mrf.mxu0
  %v645 = vadd.f32 0.0, %v644
  %v646 = vpop.f32.mrf.mxu0
  %647 = vmatprep.mubr.f32.mxu0 0.0
  %648 = vmatmul.mubr.f32.gmra.mxu0 %v298
  %v649 = vpop.f32.mrf.mxu0
  %v650 = vadd.f32 0.0, %v649
  %v651 = vpop.f32.mrf.mxu0
  %652 = vmatprep.mubr.f32.mxu0 0.0
  %653 = vmatmul.mubr.f32.gmra.mxu0 %v301
  %v654 = vpop.f32.mrf.mxu0
  %v655 = vadd.f32 0.0, %v654
  %v656 = vpop.f32.mrf.mxu0
  %657 = vmatprep.mubr.f32.mxu0 0.0
  %658 = vmatmul.mubr.f32.gmra.mxu0 %v304
  %v659 = vpop.f32.mrf.mxu0
  %v660 = vadd.f32 0.0, %v659
  %v661 = vpop.f32.mrf.mxu0
  %662 = vmatprep.mubr.f32.mxu0 0.0
  %663 = vmatmul.mubr.f32.gmra.mxu0 %v307
  %v664 = vpop.f32.mrf.mxu0
  %v665 = vadd.f32 0.0, %v664
  %v666 = vpop.f32.mrf.mxu0
  %667 = vmatprep.mubr.f32.mxu0 0.0
  %668 = vmatmul.mubr.f32.gmra.mxu0 %v310
  %v669 = vpop.f32.mrf.mxu0
  %v670 = vadd.f32 0.0, %v669
  %v671 = vpop.f32.mrf.mxu0
  %672 = vmatprep.mubr.f32.mxu0 0.0
  %673 = vmatmul.mubr.f32.gmra.mxu0 %v313
  %v674 = vpop.f32.mrf.mxu0
  %v675 = vadd.f32 0.0, %v674
  %v676 = vpop.f32.mrf.mxu0
  %677 = vmatprep.mubr.f32.mxu0 0.0
  %678 = vmatmul.mubr.f32.gmra.mxu0 %v316
  %v679 = vpop.f32.mrf.mxu0
  %v680 = vadd.f32 0.0, %v679
  %v681 = vpop.f32.mrf.mxu0
  %682 = vmatprep.mubr.f32.mxu0 0.0
  %683 = vmatmul.mubr.f32.gmra.mxu0 %v319
  %v684 = vpop.f32.mrf.mxu0
  %v685 = vadd.f32 0.0, %v684
  %v686 = vpop.f32.mrf.mxu0
  %687 = vmatprep.mubr.f32.mxu0 0.0
  %688 = vmatmul.mubr.f32.gmra.mxu0 %v322
  %v689 = vpop.f32.mrf.mxu0
  %v690 = vadd.f32 0.0, %v689
  %v691 = vpop.f32.mrf.mxu0
  %692 = vmatprep.mubr.f32.mxu0 0.0
  %693 = vmatmul.mubr.f32.gmra.mxu0 %v325
  %v694 = vpop.f32.mrf.mxu0
  %v695 = vadd.f32 0.0, %v694
  %v696 = vpop.f32.mrf.mxu0
  %697 = vmatprep.mubr.f32.mxu0 0.0
  %698 = vmatmul.mubr.f32.gmra.mxu0 %v328
  %v699 = vpop.f32.mrf.mxu0
  %v700 = vadd.f32 0.0, %v699
  %v701 = vpop.f32.mrf.mxu0
  %702 = vmatprep.mubr.f32.mxu0 0.0
  %703 = vmatmul.mubr.f32.gmra.mxu0 %v331
  %v704 = vpop.f32.mrf.mxu0
  %v705 = vadd.f32 0.0, %v704
  %v706 = vpop.f32.mrf.mxu0
  %707 = vmatprep.mubr.f32.mxu0 0.0
  %708 = vmatmul.mubr.f32.gmra.mxu0 %v334
  %v709 = vpop.f32.mrf.mxu0
  %v710 = vadd.f32 0.0, %v709
  %v711 = vpop.f32.mrf.mxu0
  %712 = vmatprep.mubr.f32.mxu0 0.0
  %713 = vmatmul.mubr.f32.gmra.mxu0 %v337
  %v714 = vpop.f32.mrf.mxu0
  %v715 = vadd.f32 0.0, %v714
  %v716 = vpop.f32.mrf.mxu0
  %717 = vmatprep.mubr.f32.mxu0 0.0
  %718 = vmatmul.mubr.f32.gmra.mxu0 %v340
  %v719 = vpop.f32.mrf.mxu0
  %v720 = vadd.f32 0.0, %v719
  %v721 = vpop.f32.mrf.mxu0
  %722 = vmatprep.mubr.f32.mxu0 0.0
  %723 = vmatmul.mubr.f32.gmra.mxu0 %v343
  %v724 = vpop.f32.mrf.mxu0
  %v725 = vadd.f32 0.0, %v724
  %v726 = vpop.f32.mrf.mxu0
  %727 = vmatprep.mubr.f32.mxu0 0.0
  %728 = vmatmul.mubr.f32.gmra.mxu0 %v346
  %v729 = vpop.f32.mrf.mxu0
  %v730 = vadd.f32 0.0, %v729
  %v731 = vpop.f32.mrf.mxu0
  %732 = vmatprep.mubr.f32.mxu0 0.0
  %733 = vmatmul.mubr.f32.gmra.mxu0 %v349
  %v734 = vpop.f32.mrf.mxu0
  %v735 = vadd.f32 0.0, %v734
  %v736 = vpop.f32.mrf.mxu0
  %737 = vmatprep.mubr.f32.mxu0 0.0
  %738 = vmatmul.mubr.f32.gmra.mxu0 %v352
  %v739 = vpop.f32.mrf.mxu0
  %v740 = vadd.f32 0.0, %v739
  %v741 = vpop.f32.mrf.mxu0
  %742 = vmatprep.mubr.f32.mxu0 0.0
  %743 = vmatmul.mubr.f32.gmra.mxu0 %v355
  %v744 = vpop.f32.mrf.mxu0
  %v745 = vadd.f32 0.0, %v744
  %v746 = vpop.f32.mrf.mxu0
  %747 = vmatprep.mubr.f32.mxu0 0.0
  %748 = vmatmul.mubr.f32.gmra.mxu0 %v358
  %v749 = vpop.f32.mrf.mxu0
  %v750 = vadd.f32 0.0, %v749
  %v751 = vpop.f32.mrf.mxu0
  %752 = vmatprep.mubr.f32.mxu0 0.0
  %753 = vmatmul.mubr.f32.gmra.mxu0 %v361
  %v754 = vpop.f32.mrf.mxu0
  %v755 = vadd.f32 0.0, %v754
  %v756 = vpop.f32.mrf.mxu0
  %757 = vmatprep.mubr.f32.mxu0 0.0
  %758 = vmatmul.mubr.f32.gmra.mxu0 %v364
  %v759 = vpop.f32.mrf.mxu0
  %v760 = vadd.f32 0.0, %v759
  %v761 = vpop.f32.mrf.mxu0
  %762 = vmatprep.mubr.f32.mxu0 0.0
  %763 = vmatmul.mubr.f32.gmra.mxu0 %v367
  %v764 = vpop.f32.mrf.mxu0
  %v765 = vadd.f32 0.0, %v764
  %v766 = vpop.f32.mrf.mxu0
  %767 = vmatprep.mubr.f32.mxu0 0.0
  %768 = vmatmul.mubr.f32.gmra.mxu0 %v370
  %v769 = vpop.f32.mrf.mxu0
  %v770 = vadd.f32 0.0, %v769
  %v771 = vpop.f32.mrf.mxu0
  %772 = vmatprep.mubr.f32.mxu0 0.0
  %773 = vmatmul.mubr.f32.gmra.mxu0 %v373
  %v774 = vpop.f32.mrf.mxu0
  %v775 = vadd.f32 0.0, %v774
  %v776 = vpop.f32.mrf.mxu0
  %777 = vmatprep.mubr.f32.mxu0 0.0
  %778 = vmatmul.mubr.f32.gmra.mxu0 %v376
  %v779 = vpop.f32.mrf.mxu0
  %v780 = vadd.f32 0.0, %v779
  %v781 = vpop.f32.mrf.mxu0
  %782 = vmatprep.mubr.f32.mxu0 0.0
  %783 = vmatmul.mubr.f32.gmra.mxu0 %v379
  %v784 = vpop.f32.mrf.mxu0
  %v785 = vadd.f32 0.0, %v784
  %v786 = vpop.f32.mrf.mxu0
  %787 = vmatprep.mubr.f32.mxu0 0.0
  %788 = vmatmul.mubr.f32.gmra.mxu0 %v382
  %v789 = vpop.f32.mrf.mxu0
  %v790 = vadd.f32 0.0, %v789
  %v791 = vpop.f32.mrf.mxu0
  %792 = vmatprep.mubr.f32.mxu0 0.0
  %793 = vmatmul.mubr.f32.gmra.mxu0 %v385
  %v794 = vpop.f32.mrf.mxu0
  %v795 = vadd.f32 0.0, %v794
  %v796 = vpop.f32.mrf.mxu0
  %797 = vmatprep.mubr.f32.mxu0 0.0
  %798 = vmatmul.mubr.f32.gmra.mxu0 %v388
  %v799 = vpop.f32.mrf.mxu0
  %v800 = vadd.f32 0.0, %v799
  %v801 = vpop.f32.mrf.mxu0
  %802 = vmatprep.mubr.f32.mxu0 0.0
  %803 = vmatmul.mubr.f32.gmra.mxu0 %v391
  %v804 = vpop.f32.mrf.mxu0
  %v805 = vadd.f32 0.0, %v804
  %v806 = vpop.f32.mrf.mxu0
  %807 = vmatprep.mubr.f32.mxu0 0.0
  %808 = vmatmul.mubr.f32.gmra.mxu0 %v394
  %v809 = vpop.f32.mrf.mxu0
  %v810 = vadd.f32 0.0, %v809
  %v811 = vpop.f32.mrf.mxu0
  %812 = vmatprep.mubr.f32.mxu0 0.0
  %813 = vmatmul.mubr.f32.gmra.mxu0 %v397
  %v814 = vpop.f32.mrf.mxu0
  %v815 = vadd.f32 0.0, %v814
  %v816 = vpop.f32.mrf.mxu0
  %817 = vmatprep.mubr.f32.mxu0 0.0
  %818 = vmatmul.mubr.f32.gmra.mxu0 %v400
  %v819 = vpop.f32.mrf.mxu0
  %v820 = vadd.f32 0.0, %v819
  %v821 = vpop.f32.mrf.mxu0
  %822 = vmatprep.mubr.f32.mxu0 0.0
  %823 = vmatmul.mubr.f32.gmra.mxu0 %v403
  %v824 = vpop.f32.mrf.mxu0
  %v825 = vadd.f32 0.0, %v824
  %v826 = vpop.f32.mrf.mxu0
  %827 = vmatprep.mubr.f32.mxu0 0.0
  %828 = vmatmul.mubr.f32.gmra.mxu0 %v406
  %v829 = vpop.f32.mrf.mxu0
  %v830 = vadd.f32 0.0, %v829
  %v831 = vpop.f32.mrf.mxu0
  %832 = vmatprep.mubr.f32.mxu0 0.0
  %833 = vmatmul.mubr.f32.gmra.mxu0 %v409
  %v834 = vpop.f32.mrf.mxu0
  %v835 = vadd.f32 0.0, %v834
  %v836 = vpop.f32.mrf.mxu0
  %837 = vmatprep.mubr.f32.mxu0 0.0
  %838 = vmatmul.mubr.f32.gmra.mxu0 %v412
  %v839 = vpop.f32.mrf.mxu0
  %v840 = vadd.f32 0.0, %v839
  %v841 = vpop.f32.mrf.mxu0
  %842 = vmatprep.mubr.f32.mxu0 0.0
  %843 = vmatmul.mubr.f32.gmra.mxu0 %v415
  %v844 = vpop.f32.mrf.mxu0
  %v845 = vadd.f32 0.0, %v844
  %v846 = vpop.f32.mrf.mxu0
  %847 = vmatprep.mubr.f32.mxu0 0.0
  %848 = vmatmul.mubr.f32.gmra.mxu0 %v418
  %v849 = vpop.f32.mrf.mxu0
  %v850 = vadd.f32 0.0, %v849
  %v851 = vpop.f32.mrf.mxu0
  %852 = vdwg.mxu0
  %v853 = vld [vmem:[%s2] sm:$0x1]
  %v855 = vlaneseq
  %v856 = vshrl.u32 %v855, 7
  %v857 = vsub.s32 0, %v856
  %v858 = vrot.slane %v853, %v857
  %v860 = vsub.f32 %v535, %v858
  %v861 = vsub.f32 %v540, %v858
  %v862 = vsub.f32 %v545, %v858
  %v863 = vsub.f32 %v550, %v858
  %v864 = vsub.f32 %v555, %v858
  %v865 = vsub.f32 %v560, %v858
  %v866 = vsub.f32 %v565, %v858
  %v867 = vsub.f32 %v570, %v858
  %v868 = vsub.f32 %v575, %v858
  %v869 = vsub.f32 %v580, %v858
  %v870 = vsub.f32 %v585, %v858
  %v871 = vsub.f32 %v590, %v858
  %v872 = vsub.f32 %v595, %v858
  %v873 = vsub.f32 %v600, %v858
  %v874 = vsub.f32 %v605, %v858
  %v875 = vsub.f32 %v610, %v858
  %v876 = vsub.f32 %v615, %v858
  %v877 = vsub.f32 %v620, %v858
  %v878 = vsub.f32 %v625, %v858
  %v879 = vsub.f32 %v630, %v858
  %v880 = vsub.f32 %v635, %v858
  %v881 = vsub.f32 %v640, %v858
  %v882 = vsub.f32 %v645, %v858
  %v883 = vsub.f32 %v650, %v858
  %v884 = vsub.f32 %v655, %v858
  %v885 = vsub.f32 %v660, %v858
  %v886 = vsub.f32 %v665, %v858
  %v887 = vsub.f32 %v670, %v858
  %v888 = vsub.f32 %v675, %v858
  %v889 = vsub.f32 %v680, %v858
  %v890 = vsub.f32 %v685, %v858
  %v891 = vsub.f32 %v690, %v858
  %v892 = vsub.f32 %v695, %v858
  %v893 = vsub.f32 %v700, %v858
  %v894 = vsub.f32 %v705, %v858
  %v895 = vsub.f32 %v710, %v858
  %v896 = vsub.f32 %v715, %v858
  %v897 = vsub.f32 %v720, %v858
  %v898 = vsub.f32 %v725, %v858
  %v899 = vsub.f32 %v730, %v858
  %v900 = vsub.f32 %v735, %v858
  %v901 = vsub.f32 %v740, %v858
  %v902 = vsub.f32 %v745, %v858
  %v903 = vsub.f32 %v750, %v858
  %v904 = vsub.f32 %v755, %v858
  %v905 = vsub.f32 %v760, %v858
  %v906 = vsub.f32 %v765, %v858
  %v907 = vsub.f32 %v770, %v858
  %v908 = vsub.f32 %v775, %v858
  %v909 = vsub.f32 %v780, %v858
  %v910 = vsub.f32 %v785, %v858
  %v911 = vsub.f32 %v790, %v858
  %v912 = vsub.f32 %v795, %v858
  %v913 = vsub.f32 %v800, %v858
  %v914 = vsub.f32 %v805, %v858
  %v915 = vsub.f32 %v810, %v858
  %v916 = vsub.f32 %v815, %v858
  %v917 = vsub.f32 %v820, %v858
  %v918 = vsub.f32 %v825, %v858
  %v919 = vsub.f32 %v830, %v858
  %v920 = vsub.f32 %v835, %v858
  %v921 = vsub.f32 %v840, %v858
  %v922 = vsub.f32 %v845, %v858
  %v923 = vsub.f32 %v850, %v858
  %924 = vmax.xlane.f32.xlu0 %v860
  %v925 = vpop.xlane.xlu0 %924
  %926 = vmax.xlane.f32.xlu0 %v861
  %v927 = vpop.xlane.xlu0 %926
  %928 = vmax.xlane.f32.xlu0 %v862
  %v929 = vpop.xlane.xlu0 %928
  %930 = vmax.xlane.f32.xlu0 %v863
  %v931 = vpop.xlane.xlu0 %930
  %932 = vmax.xlane.f32.xlu0 %v864
  %v933 = vpop.xlane.xlu0 %932
  %934 = vmax.xlane.f32.xlu0 %v865
  %v935 = vpop.xlane.xlu0 %934
  %936 = vmax.xlane.f32.xlu0 %v866
  %v937 = vpop.xlane.xlu0 %936
  %938 = vmax.xlane.f32.xlu0 %v867
  %v939 = vpop.xlane.xlu0 %938
  %940 = vmax.xlane.f32.xlu0 %v868
  %v941 = vpop.xlane.xlu0 %940
  %942 = vmax.xlane.f32.xlu0 %v869
  %v943 = vpop.xlane.xlu0 %942
  %944 = vmax.xlane.f32.xlu0 %v870
  %v945 = vpop.xlane.xlu0 %944
  %946 = vmax.xlane.f32.xlu0 %v871
  %v947 = vpop.xlane.xlu0 %946
  %948 = vmax.xlane.f32.xlu0 %v872
  %v949 = vpop.xlane.xlu0 %948
  %950 = vmax.xlane.f32.xlu0 %v873
  %v951 = vpop.xlane.xlu0 %950
  %952 = vmax.xlane.f32.xlu0 %v874
  %v953 = vpop.xlane.xlu0 %952
  %954 = vmax.xlane.f32.xlu0 %v875
  %v955 = vpop.xlane.xlu0 %954
  %956 = vmax.xlane.f32.xlu0 %v876
  %v957 = vpop.xlane.xlu0 %956
  %958 = vmax.xlane.f32.xlu0 %v877
  %v959 = vpop.xlane.xlu0 %958
  %960 = vmax.xlane.f32.xlu0 %v878
  %v961 = vpop.xlane.xlu0 %960
  %962 = vmax.xlane.f32.xlu0 %v879
  %v963 = vpop.xlane.xlu0 %962
  %964 = vmax.xlane.f32.xlu0 %v880
  %v965 = vpop.xlane.xlu0 %964
  %966 = vmax.xlane.f32.xlu0 %v881
  %v967 = vpop.xlane.xlu0 %966
  %968 = vmax.xlane.f32.xlu0 %v882
  %v969 = vpop.xlane.xlu0 %968
  %970 = vmax.xlane.f32.xlu0 %v883
  %v971 = vpop.xlane.xlu0 %970
  %972 = vmax.xlane.f32.xlu0 %v884
  %v973 = vpop.xlane.xlu0 %972
  %974 = vmax.xlane.f32.xlu0 %v885
  %v975 = vpop.xlane.xlu0 %974
  %976 = vmax.xlane.f32.xlu0 %v886
  %v977 = vpop.xlane.xlu0 %976
  %978 = vmax.xlane.f32.xlu0 %v887
  %v979 = vpop.xlane.xlu0 %978
  %980 = vmax.xlane.f32.xlu0 %v888
  %v981 = vpop.xlane.xlu0 %980
  %982 = vmax.xlane.f32.xlu0 %v889
  %v983 = vpop.xlane.xlu0 %982
  %984 = vmax.xlane.f32.xlu0 %v890
  %v985 = vpop.xlane.xlu0 %984
  %986 = vmax.xlane.f32.xlu0 %v891
  %v987 = vpop.xlane.xlu0 %986
  %988 = vmax.xlane.f32.xlu0 %v892
  %v989 = vpop.xlane.xlu0 %988
  %990 = vmax.xlane.f32.xlu0 %v893
  %v991 = vpop.xlane.xlu0 %990
  %992 = vmax.xlane.f32.xlu0 %v894
  %v993 = vpop.xlane.xlu0 %992
  %994 = vmax.xlane.f32.xlu0 %v895
  %v995 = vpop.xlane.xlu0 %994
  %996 = vmax.xlane.f32.xlu0 %v896
  %v997 = vpop.xlane.xlu0 %996
  %998 = vmax.xlane.f32.xlu0 %v897
  %v999 = vpop.xlane.xlu0 %998
  %1000 = vmax.xlane.f32.xlu0 %v898
  %v1001 = vpop.xlane.xlu0 %1000
  %1002 = vmax.xlane.f32.xlu0 %v899
  %v1003 = vpop.xlane.xlu0 %1002
  %1004 = vmax.xlane.f32.xlu0 %v900
  %v1005 = vpop.xlane.xlu0 %1004
  %1006 = vmax.xlane.f32.xlu0 %v901
  %v1007 = vpop.xlane.xlu0 %1006
  %1008 = vmax.xlane.f32.xlu0 %v902
  %v1009 = vpop.xlane.xlu0 %1008
  %1010 = vmax.xlane.f32.xlu0 %v903
  %v1011 = vpop.xlane.xlu0 %1010
  %1012 = vmax.xlane.f32.xlu0 %v904
  %v1013 = vpop.xlane.xlu0 %1012
  %1014 = vmax.xlane.f32.xlu0 %v905
  %v1015 = vpop.xlane.xlu0 %1014
  %1016 = vmax.xlane.f32.xlu0 %v906
  %v1017 = vpop.xlane.xlu0 %1016
  %1018 = vmax.xlane.f32.xlu0 %v907
  %v1019 = vpop.xlane.xlu0 %1018
  %1020 = vmax.xlane.f32.xlu0 %v908
  %v1021 = vpop.xlane.xlu0 %1020
  %1022 = vmax.xlane.f32.xlu0 %v909
  %v1023 = vpop.xlane.xlu0 %1022
  %1024 = vmax.xlane.f32.xlu0 %v910
  %v1025 = vpop.xlane.xlu0 %1024
  %1026 = vmax.xlane.f32.xlu0 %v911
  %v1027 = vpop.xlane.xlu0 %1026
  %1028 = vmax.xlane.f32.xlu0 %v912
  %v1029 = vpop.xlane.xlu0 %1028
  %1030 = vmax.xlane.f32.xlu0 %v913
  %v1031 = vpop.xlane.xlu0 %1030
  %1032 = vmax.xlane.f32.xlu0 %v914
  %v1033 = vpop.xlane.xlu0 %1032
  %1034 = vmax.xlane.f32.xlu0 %v915
  %v1035 = vpop.xlane.xlu0 %1034
  %1036 = vmax.xlane.f32.xlu0 %v916
  %v1037 = vpop.xlane.xlu0 %1036
  %1038 = vmax.xlane.f32.xlu0 %v917
  %v1039 = vpop.xlane.xlu0 %1038
  %1040 = vmax.xlane.f32.xlu0 %v918
  %v1041 = vpop.xlane.xlu0 %1040
  %1042 = vmax.xlane.f32.xlu0 %v919
  %v1043 = vpop.xlane.xlu0 %1042
  %1044 = vmax.xlane.f32.xlu0 %v920
  %v1045 = vpop.xlane.xlu0 %1044
  %1046 = vmax.xlane.f32.xlu0 %v921
  %v1047 = vpop.xlane.xlu0 %1046
  %1048 = vmax.xlane.f32.xlu0 %v922
  %v1049 = vpop.xlane.xlu0 %1048
  %1050 = vmax.xlane.f32.xlu0 %v923
  %v1051 = vpop.xlane.xlu0 %1050
  %v1052 = vlaneseq
  %v1053 = vand.u32 %v1052, 127
  %vm1054 = vcmp.eq.f32.partialorder %v860, %v925
  %vm1055 = vcmp.eq.f32.partialorder %v861, %v927
  %vm1056 = vcmp.eq.f32.partialorder %v862, %v929
  %vm1057 = vcmp.eq.f32.partialorder %v863, %v931
  %vm1058 = vcmp.eq.f32.partialorder %v864, %v933
  %vm1059 = vcmp.eq.f32.partialorder %v865, %v935
  %vm1060 = vcmp.eq.f32.partialorder %v866, %v937
  %vm1061 = vcmp.eq.f32.partialorder %v867, %v939
  %vm1062 = vcmp.eq.f32.partialorder %v868, %v941
  %vm1063 = vcmp.eq.f32.partialorder %v869, %v943
  %vm1064 = vcmp.eq.f32.partialorder %v870, %v945
  %vm1065 = vcmp.eq.f32.partialorder %v871, %v947
  %vm1066 = vcmp.eq.f32.partialorder %v872, %v949
  %vm1067 = vcmp.eq.f32.partialorder %v873, %v951
  %vm1068 = vcmp.eq.f32.partialorder %v874, %v953
  %vm1069 = vcmp.eq.f32.partialorder %v875, %v955
  %vm1070 = vcmp.eq.f32.partialorder %v876, %v957
  %vm1071 = vcmp.eq.f32.partialorder %v877, %v959
  %vm1072 = vcmp.eq.f32.partialorder %v878, %v961
  %vm1073 = vcmp.eq.f32.partialorder %v879, %v963
  %vm1074 = vcmp.eq.f32.partialorder %v880, %v965
  %vm1075 = vcmp.eq.f32.partialorder %v881, %v967
  %vm1076 = vcmp.eq.f32.partialorder %v882, %v969
  %vm1077 = vcmp.eq.f32.partialorder %v883, %v971
  %vm1078 = vcmp.eq.f32.partialorder %v884, %v973
  %vm1079 = vcmp.eq.f32.partialorder %v885, %v975
  %vm1080 = vcmp.eq.f32.partialorder %v886, %v977
  %vm1081 = vcmp.eq.f32.partialorder %v887, %v979
  %vm1082 = vcmp.eq.f32.partialorder %v888, %v981
  %vm1083 = vcmp.eq.f32.partialorder %v889, %v983
  %vm1084 = vcmp.eq.f32.partialorder %v890, %v985
  %vm1085 = vcmp.eq.f32.partialorder %v891, %v987
  %vm1086 = vcmp.eq.f32.partialorder %v892, %v989
  %vm1087 = vcmp.eq.f32.partialorder %v893, %v991
  %vm1088 = vcmp.eq.f32.partialorder %v894, %v993
  %vm1089 = vcmp.eq.f32.partialorder %v895, %v995
  %vm1090 = vcmp.eq.f32.partialorder %v896, %v997
  %vm1091 = vcmp.eq.f32.partialorder %v897, %v999
  %vm1092 = vcmp.eq.f32.partialorder %v898, %v1001
  %vm1093 = vcmp.eq.f32.partialorder %v899, %v1003
  %vm1094 = vcmp.eq.f32.partialorder %v900, %v1005
  %vm1095 = vcmp.eq.f32.partialorder %v901, %v1007
  %vm1096 = vcmp.eq.f32.partialorder %v902, %v1009
  %vm1097 = vcmp.eq.f32.partialorder %v903, %v1011
  %vm1098 = vcmp.eq.f32.partialorder %v904, %v1013
  %vm1099 = vcmp.eq.f32.partialorder %v905, %v1015
  %vm1100 = vcmp.eq.f32.partialorder %v906, %v1017
  %vm1101 = vcmp.eq.f32.partialorder %v907, %v1019
  %vm1102 = vcmp.eq.f32.partialorder %v908, %v1021
  %vm1103 = vcmp.eq.f32.partialorder %v909, %v1023
  %vm1104 = vcmp.eq.f32.partialorder %v910, %v1025
  %vm1105 = vcmp.eq.f32.partialorder %v911, %v1027
  %vm1106 = vcmp.eq.f32.partialorder %v912, %v1029
  %vm1107 = vcmp.eq.f32.partialorder %v913, %v1031
  %vm1108 = vcmp.eq.f32.partialorder %v914, %v1033
  %vm1109 = vcmp.eq.f32.partialorder %v915, %v1035
  %vm1110 = vcmp.eq.f32.partialorder %v916, %v1037
  %vm1111 = vcmp.eq.f32.partialorder %v917, %v1039
  %vm1112 = vcmp.eq.f32.partialorder %v918, %v1041
  %vm1113 = vcmp.eq.f32.partialorder %v919, %v1043
  %vm1114 = vcmp.eq.f32.partialorder %v920, %v1045
  %vm1115 = vcmp.eq.f32.partialorder %v921, %v1047
  %vm1116 = vcmp.eq.f32.partialorder %v922, %v1049
  %vm1117 = vcmp.eq.f32.partialorder %v923, %v1051
  %v1118 = vsel %vm1054, %v1053, 128
  %v1119 = vsel %vm1055, %v1053, 128
  %v1120 = vsel %vm1056, %v1053, 128
  %v1121 = vsel %vm1057, %v1053, 128
  %v1122 = vsel %vm1058, %v1053, 128
  %v1123 = vsel %vm1059, %v1053, 128
  %v1124 = vsel %vm1060, %v1053, 128
  %v1125 = vsel %vm1061, %v1053, 128
  %v1126 = vsel %vm1062, %v1053, 128
  %v1127 = vsel %vm1063, %v1053, 128
  %v1128 = vsel %vm1064, %v1053, 128
  %v1129 = vsel %vm1065, %v1053, 128
  %v1130 = vsel %vm1066, %v1053, 128
  %v1131 = vsel %vm1067, %v1053, 128
  %v1132 = vsel %vm1068, %v1053, 128
  %v1133 = vsel %vm1069, %v1053, 128
  %v1134 = vsel %vm1070, %v1053, 128
  %v1135 = vsel %vm1071, %v1053, 128
  %v1136 = vsel %vm1072, %v1053, 128
  %v1137 = vsel %vm1073, %v1053, 128
  %v1138 = vsel %vm1074, %v1053, 128
  %v1139 = vsel %vm1075, %v1053, 128
  %v1140 = vsel %vm1076, %v1053, 128
  %v1141 = vsel %vm1077, %v1053, 128
  %v1142 = vsel %vm1078, %v1053, 128
  %v1143 = vsel %vm1079, %v1053, 128
  %v1144 = vsel %vm1080, %v1053, 128
  %v1145 = vsel %vm1081, %v1053, 128
  %v1146 = vsel %vm1082, %v1053, 128
  %v1147 = vsel %vm1083, %v1053, 128
  %v1148 = vsel %vm1084, %v1053, 128
  %v1149 = vsel %vm1085, %v1053, 128
  %v1150 = vsel %vm1086, %v1053, 128
  %v1151 = vsel %vm1087, %v1053, 128
  %v1152 = vsel %vm1088, %v1053, 128
  %v1153 = vsel %vm1089, %v1053, 128
  %v1154 = vsel %vm1090, %v1053, 128
  %v1155 = vsel %vm1091, %v1053, 128
  %v1156 = vsel %vm1092, %v1053, 128
  %v1157 = vsel %vm1093, %v1053, 128
  %v1158 = vsel %vm1094, %v1053, 128
  %v1159 = vsel %vm1095, %v1053, 128
  %v1160 = vsel %vm1096, %v1053, 128
  %v1161 = vsel %vm1097, %v1053, 128
  %v1162 = vsel %vm1098, %v1053, 128
  %v1163 = vsel %vm1099, %v1053, 128
  %v1164 = vsel %vm1100, %v1053, 128
  %v1165 = vsel %vm1101, %v1053, 128
  %v1166 = vsel %vm1102, %v1053, 128
  %v1167 = vsel %vm1103, %v1053, 128
  %v1168 = vsel %vm1104, %v1053, 128
  %v1169 = vsel %vm1105, %v1053, 128
  %v1170 = vsel %vm1106, %v1053, 128
  %v1171 = vsel %vm1107, %v1053, 128
  %v1172 = vsel %vm1108, %v1053, 128
  %v1173 = vsel %vm1109, %v1053, 128
  %v1174 = vsel %vm1110, %v1053, 128
  %v1175 = vsel %vm1111, %v1053, 128
  %v1176 = vsel %vm1112, %v1053, 128
  %v1177 = vsel %vm1113, %v1053, 128
  %v1178 = vsel %vm1114, %v1053, 128
  %v1179 = vsel %vm1115, %v1053, 128
  %v1180 = vsel %vm1116, %v1053, 128
  %v1181 = vsel %vm1117, %v1053, 128
  %v1182 = vand.u32 %v1118, 65535
  %v1183 = vshra.s32 %v1118, 16
  %v1184 = vcvt.s32.f32 %v1182
  %v1185 = vcvt.s32.f32 %v1183
  %1186 = vmin.xlane.f32.xlu0 %v1185
  %v1187 = vpop.xlane.xlu0 %1186
  %vm1188 = vcmp.eq.f32.partialorder %v1185, %v1187
  %v1189 = vsel %vm1188, %v1184, inf
  %1190 = vmin.xlane.f32.xlu0 %v1189
  %v1191 = vpop.xlane.xlu0 %1190
  %v1192 = vcvt.f32.s32 %v1191
  %v1193 = vcvt.f32.s32 %v1187
  %v1194 = vshll.u32 %v1193, 16
  %v1195 = vadd.s32 %v1194, %v1192
  %v1196 = vand.u32 %v1119, 65535
  %v1197 = vshra.s32 %v1119, 16
  %v1198 = vcvt.s32.f32 %v1196
  %v1199 = vcvt.s32.f32 %v1197
  %1200 = vmin.xlane.f32.xlu0 %v1199
  %v1201 = vpop.xlane.xlu0 %1200
  %vm1202 = vcmp.eq.f32.partialorder %v1199, %v1201
  %v1203 = vsel %vm1202, %v1198, inf
  %1204 = vmin.xlane.f32.xlu0 %v1203
  %v1205 = vpop.xlane.xlu0 %1204
  %v1206 = vcvt.f32.s32 %v1205
  %v1207 = vcvt.f32.s32 %v1201
  %v1208 = vshll.u32 %v1207, 16
  %v1209 = vadd.s32 %v1208, %v1206
  %v1210 = vand.u32 %v1120, 65535
  %v1211 = vshra.s32 %v1120, 16
  %v1212 = vcvt.s32.f32 %v1210
  %v1213 = vcvt.s32.f32 %v1211
  %1214 = vmin.xlane.f32.xlu0 %v1213
  %v1215 = vpop.xlane.xlu0 %1214
  %vm1216 = vcmp.eq.f32.partialorder %v1213, %v1215
  %v1217 = vsel %vm1216, %v1212, inf
  %1218 = vmin.xlane.f32.xlu0 %v1217
  %v1219 = vpop.xlane.xlu0 %1218
  %v1220 = vcvt.f32.s32 %v1219
  %v1221 = vcvt.f32.s32 %v1215
  %v1222 = vshll.u32 %v1221, 16
  %v1223 = vadd.s32 %v1222, %v1220
  %v1224 = vand.u32 %v1121, 65535
  %v1225 = vshra.s32 %v1121, 16
  %v1226 = vcvt.s32.f32 %v1224
  %v1227 = vcvt.s32.f32 %v1225
  %1228 = vmin.xlane.f32.xlu0 %v1227
  %v1229 = vpop.xlane.xlu0 %1228
  %vm1230 = vcmp.eq.f32.partialorder %v1227, %v1229
  %v1231 = vsel %vm1230, %v1226, inf
  %1232 = vmin.xlane.f32.xlu0 %v1231
  %v1233 = vpop.xlane.xlu0 %1232
  %v1234 = vcvt.f32.s32 %v1233
  %v1235 = vcvt.f32.s32 %v1229
  %v1236 = vshll.u32 %v1235, 16
  %v1237 = vadd.s32 %v1236, %v1234
  %v1238 = vand.u32 %v1122, 65535
  %v1239 = vshra.s32 %v1122, 16
  %v1240 = vcvt.s32.f32 %v1238
  %v1241 = vcvt.s32.f32 %v1239
  %1242 = vmin.xlane.f32.xlu0 %v1241
  %v1243 = vpop.xlane.xlu0 %1242
  %vm1244 = vcmp.eq.f32.partialorder %v1241, %v1243
  %v1245 = vsel %vm1244, %v1240, inf
  %1246 = vmin.xlane.f32.xlu0 %v1245
  %v1247 = vpop.xlane.xlu0 %1246
  %v1248 = vcvt.f32.s32 %v1247
  %v1249 = vcvt.f32.s32 %v1243
  %v1250 = vshll.u32 %v1249, 16
  %v1251 = vadd.s32 %v1250, %v1248
  %v1252 = vand.u32 %v1123, 65535
  %v1253 = vshra.s32 %v1123, 16
  %v1254 = vcvt.s32.f32 %v1252
  %v1255 = vcvt.s32.f32 %v1253
  %1256 = vmin.xlane.f32.xlu0 %v1255
  %v1257 = vpop.xlane.xlu0 %1256
  %vm1258 = vcmp.eq.f32.partialorder %v1255, %v1257
  %v1259 = vsel %vm1258, %v1254, inf
  %1260 = vmin.xlane.f32.xlu0 %v1259
  %v1261 = vpop.xlane.xlu0 %1260
  %v1262 = vcvt.f32.s32 %v1261
  %v1263 = vcvt.f32.s32 %v1257
  %v1264 = vshll.u32 %v1263, 16
  %v1265 = vadd.s32 %v1264, %v1262
  %v1266 = vand.u32 %v1124, 65535
  %v1267 = vshra.s32 %v1124, 16
  %v1268 = vcvt.s32.f32 %v1266
  %v1269 = vcvt.s32.f32 %v1267
  %1270 = vmin.xlane.f32.xlu0 %v1269
  %v1271 = vpop.xlane.xlu0 %1270
  %vm1272 = vcmp.eq.f32.partialorder %v1269, %v1271
  %v1273 = vsel %vm1272, %v1268, inf
  %1274 = vmin.xlane.f32.xlu0 %v1273
  %v1275 = vpop.xlane.xlu0 %1274
  %v1276 = vcvt.f32.s32 %v1275
  %v1277 = vcvt.f32.s32 %v1271
  %v1278 = vshll.u32 %v1277, 16
  %v1279 = vadd.s32 %v1278, %v1276
  %v1280 = vand.u32 %v1125, 65535
  %v1281 = vshra.s32 %v1125, 16
  %v1282 = vcvt.s32.f32 %v1280
  %v1283 = vcvt.s32.f32 %v1281
  %1284 = vmin.xlane.f32.xlu0 %v1283
  %v1285 = vpop.xlane.xlu0 %1284
  %vm1286 = vcmp.eq.f32.partialorder %v1283, %v1285
  %v1287 = vsel %vm1286, %v1282, inf
  %1288 = vmin.xlane.f32.xlu0 %v1287
  %v1289 = vpop.xlane.xlu0 %1288
  %v1290 = vcvt.f32.s32 %v1289
  %v1291 = vcvt.f32.s32 %v1285
  %v1292 = vshll.u32 %v1291, 16
  %v1293 = vadd.s32 %v1292, %v1290
  %v1294 = vand.u32 %v1126, 65535
  %v1295 = vshra.s32 %v1126, 16
  %v1296 = vcvt.s32.f32 %v1294
  %v1297 = vcvt.s32.f32 %v1295
  %1298 = vmin.xlane.f32.xlu0 %v1297
  %v1299 = vpop.xlane.xlu0 %1298
  %vm1300 = vcmp.eq.f32.partialorder %v1297, %v1299
  %v1301 = vsel %vm1300, %v1296, inf
  %1302 = vmin.xlane.f32.xlu0 %v1301
  %v1303 = vpop.xlane.xlu0 %1302
  %v1304 = vcvt.f32.s32 %v1303
  %v1305 = vcvt.f32.s32 %v1299
  %v1306 = vshll.u32 %v1305, 16
  %v1307 = vadd.s32 %v1306, %v1304
  %v1308 = vand.u32 %v1127, 65535
  %v1309 = vshra.s32 %v1127, 16
  %v1310 = vcvt.s32.f32 %v1308
  %v1311 = vcvt.s32.f32 %v1309
  %1312 = vmin.xlane.f32.xlu0 %v1311
  %v1313 = vpop.xlane.xlu0 %1312
  %vm1314 = vcmp.eq.f32.partialorder %v1311, %v1313
  %v1315 = vsel %vm1314, %v1310, inf
  %1316 = vmin.xlane.f32.xlu0 %v1315
  %v1317 = vpop.xlane.xlu0 %1316
  %v1318 = vcvt.f32.s32 %v1317
  %v1319 = vcvt.f32.s32 %v1313
  %v1320 = vshll.u32 %v1319, 16
  %v1321 = vadd.s32 %v1320, %v1318
  %v1322 = vand.u32 %v1128, 65535
  %v1323 = vshra.s32 %v1128, 16
  %v1324 = vcvt.s32.f32 %v1322
  %v1325 = vcvt.s32.f32 %v1323
  %1326 = vmin.xlane.f32.xlu0 %v1325
  %v1327 = vpop.xlane.xlu0 %1326
  %vm1328 = vcmp.eq.f32.partialorder %v1325, %v1327
  %v1329 = vsel %vm1328, %v1324, inf
  %1330 = vmin.xlane.f32.xlu0 %v1329
  %v1331 = vpop.xlane.xlu0 %1330
  %v1332 = vcvt.f32.s32 %v1331
  %v1333 = vcvt.f32.s32 %v1327
  %v1334 = vshll.u32 %v1333, 16
  %v1335 = vadd.s32 %v1334, %v1332
  %v1336 = vand.u32 %v1129, 65535
  %v1337 = vshra.s32 %v1129, 16
  %v1338 = vcvt.s32.f32 %v1336
  %v1339 = vcvt.s32.f32 %v1337
  %1340 = vmin.xlane.f32.xlu0 %v1339
  %v1341 = vpop.xlane.xlu0 %1340
  %vm1342 = vcmp.eq.f32.partialorder %v1339, %v1341
  %v1343 = vsel %vm1342, %v1338, inf
  %1344 = vmin.xlane.f32.xlu0 %v1343
  %v1345 = vpop.xlane.xlu0 %1344
  %v1346 = vcvt.f32.s32 %v1345
  %v1347 = vcvt.f32.s32 %v1341
  %v1348 = vshll.u32 %v1347, 16
  %v1349 = vadd.s32 %v1348, %v1346
  %v1350 = vand.u32 %v1130, 65535
  %v1351 = vshra.s32 %v1130, 16
  %v1352 = vcvt.s32.f32 %v1350
  %v1353 = vcvt.s32.f32 %v1351
  %1354 = vmin.xlane.f32.xlu0 %v1353
  %v1355 = vpop.xlane.xlu0 %1354
  %vm1356 = vcmp.eq.f32.partialorder %v1353, %v1355
  %v1357 = vsel %vm1356, %v1352, inf
  %1358 = vmin.xlane.f32.xlu0 %v1357
  %v1359 = vpop.xlane.xlu0 %1358
  %v1360 = vcvt.f32.s32 %v1359
  %v1361 = vcvt.f32.s32 %v1355
  %v1362 = vshll.u32 %v1361, 16
  %v1363 = vadd.s32 %v1362, %v1360
  %v1364 = vand.u32 %v1131, 65535
  %v1365 = vshra.s32 %v1131, 16
  %v1366 = vcvt.s32.f32 %v1364
  %v1367 = vcvt.s32.f32 %v1365
  %1368 = vmin.xlane.f32.xlu0 %v1367
  %v1369 = vpop.xlane.xlu0 %1368
  %vm1370 = vcmp.eq.f32.partialorder %v1367, %v1369
  %v1371 = vsel %vm1370, %v1366, inf
  %1372 = vmin.xlane.f32.xlu0 %v1371
  %v1373 = vpop.xlane.xlu0 %1372
  %v1374 = vcvt.f32.s32 %v1373
  %v1375 = vcvt.f32.s32 %v1369
  %v1376 = vshll.u32 %v1375, 16
  %v1377 = vadd.s32 %v1376, %v1374
  %v1378 = vand.u32 %v1132, 65535
  %v1379 = vshra.s32 %v1132, 16
  %v1380 = vcvt.s32.f32 %v1378
  %v1381 = vcvt.s32.f32 %v1379
  %1382 = vmin.xlane.f32.xlu0 %v1381
  %v1383 = vpop.xlane.xlu0 %1382
  %vm1384 = vcmp.eq.f32.partialorder %v1381, %v1383
  %v1385 = vsel %vm1384, %v1380, inf
  %1386 = vmin.xlane.f32.xlu0 %v1385
  %v1387 = vpop.xlane.xlu0 %1386
  %v1388 = vcvt.f32.s32 %v1387
  %v1389 = vcvt.f32.s32 %v1383
  %v1390 = vshll.u32 %v1389, 16
  %v1391 = vadd.s32 %v1390, %v1388
  %v1392 = vand.u32 %v1133, 65535
  %v1393 = vshra.s32 %v1133, 16
  %v1394 = vcvt.s32.f32 %v1392
  %v1395 = vcvt.s32.f32 %v1393
  %1396 = vmin.xlane.f32.xlu0 %v1395
  %v1397 = vpop.xlane.xlu0 %1396
  %vm1398 = vcmp.eq.f32.partialorder %v1395, %v1397
  %v1399 = vsel %vm1398, %v1394, inf
  %1400 = vmin.xlane.f32.xlu0 %v1399
  %v1401 = vpop.xlane.xlu0 %1400
  %v1402 = vcvt.f32.s32 %v1401
  %v1403 = vcvt.f32.s32 %v1397
  %v1404 = vshll.u32 %v1403, 16
  %v1405 = vadd.s32 %v1404, %v1402
  %v1406 = vand.u32 %v1134, 65535
  %v1407 = vshra.s32 %v1134, 16
  %v1408 = vcvt.s32.f32 %v1406
  %v1409 = vcvt.s32.f32 %v1407
  %1410 = vmin.xlane.f32.xlu0 %v1409
  %v1411 = vpop.xlane.xlu0 %1410
  %vm1412 = vcmp.eq.f32.partialorder %v1409, %v1411
  %v1413 = vsel %vm1412, %v1408, inf
  %1414 = vmin.xlane.f32.xlu0 %v1413
  %v1415 = vpop.xlane.xlu0 %1414
  %v1416 = vcvt.f32.s32 %v1415
  %v1417 = vcvt.f32.s32 %v1411
  %v1418 = vshll.u32 %v1417, 16
  %v1419 = vadd.s32 %v1418, %v1416
  %v1420 = vand.u32 %v1135, 65535
  %v1421 = vshra.s32 %v1135, 16
  %v1422 = vcvt.s32.f32 %v1420
  %v1423 = vcvt.s32.f32 %v1421
  %1424 = vmin.xlane.f32.xlu0 %v1423
  %v1425 = vpop.xlane.xlu0 %1424
  %vm1426 = vcmp.eq.f32.partialorder %v1423, %v1425
  %v1427 = vsel %vm1426, %v1422, inf
  %1428 = vmin.xlane.f32.xlu0 %v1427
  %v1429 = vpop.xlane.xlu0 %1428
  %v1430 = vcvt.f32.s32 %v1429
  %v1431 = vcvt.f32.s32 %v1425
  %v1432 = vshll.u32 %v1431, 16
  %v1433 = vadd.s32 %v1432, %v1430
  %v1434 = vand.u32 %v1136, 65535
  %v1435 = vshra.s32 %v1136, 16
  %v1436 = vcvt.s32.f32 %v1434
  %v1437 = vcvt.s32.f32 %v1435
  %1438 = vmin.xlane.f32.xlu0 %v1437
  %v1439 = vpop.xlane.xlu0 %1438
  %vm1440 = vcmp.eq.f32.partialorder %v1437, %v1439
  %v1441 = vsel %vm1440, %v1436, inf
  %1442 = vmin.xlane.f32.xlu0 %v1441
  %v1443 = vpop.xlane.xlu0 %1442
  %v1444 = vcvt.f32.s32 %v1443
  %v1445 = vcvt.f32.s32 %v1439
  %v1446 = vshll.u32 %v1445, 16
  %v1447 = vadd.s32 %v1446, %v1444
  %v1448 = vand.u32 %v1137, 65535
  %v1449 = vshra.s32 %v1137, 16
  %v1450 = vcvt.s32.f32 %v1448
  %v1451 = vcvt.s32.f32 %v1449
  %1452 = vmin.xlane.f32.xlu0 %v1451
  %v1453 = vpop.xlane.xlu0 %1452
  %vm1454 = vcmp.eq.f32.partialorder %v1451, %v1453
  %v1455 = vsel %vm1454, %v1450, inf
  %1456 = vmin.xlane.f32.xlu0 %v1455
  %v1457 = vpop.xlane.xlu0 %1456
  %v1458 = vcvt.f32.s32 %v1457
  %v1459 = vcvt.f32.s32 %v1453
  %v1460 = vshll.u32 %v1459, 16
  %v1461 = vadd.s32 %v1460, %v1458
  %v1462 = vand.u32 %v1138, 65535
  %v1463 = vshra.s32 %v1138, 16
  %v1464 = vcvt.s32.f32 %v1462
  %v1465 = vcvt.s32.f32 %v1463
  %1466 = vmin.xlane.f32.xlu0 %v1465
  %v1467 = vpop.xlane.xlu0 %1466
  %vm1468 = vcmp.eq.f32.partialorder %v1465, %v1467
  %v1469 = vsel %vm1468, %v1464, inf
  %1470 = vmin.xlane.f32.xlu0 %v1469
  %v1471 = vpop.xlane.xlu0 %1470
  %v1472 = vcvt.f32.s32 %v1471
  %v1473 = vcvt.f32.s32 %v1467
  %v1474 = vshll.u32 %v1473, 16
  %v1475 = vadd.s32 %v1474, %v1472
  %v1476 = vand.u32 %v1139, 65535
  %v1477 = vshra.s32 %v1139, 16
  %v1478 = vcvt.s32.f32 %v1476
  %v1479 = vcvt.s32.f32 %v1477
  %1480 = vmin.xlane.f32.xlu0 %v1479
  %v1481 = vpop.xlane.xlu0 %1480
  %vm1482 = vcmp.eq.f32.partialorder %v1479, %v1481
  %v1483 = vsel %vm1482, %v1478, inf
  %1484 = vmin.xlane.f32.xlu0 %v1483
  %v1485 = vpop.xlane.xlu0 %1484
  %v1486 = vcvt.f32.s32 %v1485
  %v1487 = vcvt.f32.s32 %v1481
  %v1488 = vshll.u32 %v1487, 16
  %v1489 = vadd.s32 %v1488, %v1486
  %v1490 = vand.u32 %v1140, 65535
  %v1491 = vshra.s32 %v1140, 16
  %v1492 = vcvt.s32.f32 %v1490
  %v1493 = vcvt.s32.f32 %v1491
  %1494 = vmin.xlane.f32.xlu0 %v1493
  %v1495 = vpop.xlane.xlu0 %1494
  %vm1496 = vcmp.eq.f32.partialorder %v1493, %v1495
  %v1497 = vsel %vm1496, %v1492, inf
  %1498 = vmin.xlane.f32.xlu0 %v1497
  %v1499 = vpop.xlane.xlu0 %1498
  %v1500 = vcvt.f32.s32 %v1499
  %v1501 = vcvt.f32.s32 %v1495
  %v1502 = vshll.u32 %v1501, 16
  %v1503 = vadd.s32 %v1502, %v1500
  %v1504 = vand.u32 %v1141, 65535
  %v1505 = vshra.s32 %v1141, 16
  %v1506 = vcvt.s32.f32 %v1504
  %v1507 = vcvt.s32.f32 %v1505
  %1508 = vmin.xlane.f32.xlu0 %v1507
  %v1509 = vpop.xlane.xlu0 %1508
  %vm1510 = vcmp.eq.f32.partialorder %v1507, %v1509
  %v1511 = vsel %vm1510, %v1506, inf
  %1512 = vmin.xlane.f32.xlu0 %v1511
  %v1513 = vpop.xlane.xlu0 %1512
  %v1514 = vcvt.f32.s32 %v1513
  %v1515 = vcvt.f32.s32 %v1509
  %v1516 = vshll.u32 %v1515, 16
  %v1517 = vadd.s32 %v1516, %v1514
  %v1518 = vand.u32 %v1142, 65535
  %v1519 = vshra.s32 %v1142, 16
  %v1520 = vcvt.s32.f32 %v1518
  %v1521 = vcvt.s32.f32 %v1519
  %1522 = vmin.xlane.f32.xlu0 %v1521
  %v1523 = vpop.xlane.xlu0 %1522
  %vm1524 = vcmp.eq.f32.partialorder %v1521, %v1523
  %v1525 = vsel %vm1524, %v1520, inf
  %1526 = vmin.xlane.f32.xlu0 %v1525
  %v1527 = vpop.xlane.xlu0 %1526
  %v1528 = vcvt.f32.s32 %v1527
  %v1529 = vcvt.f32.s32 %v1523
  %v1530 = vshll.u32 %v1529, 16
  %v1531 = vadd.s32 %v1530, %v1528
  %v1532 = vand.u32 %v1143, 65535
  %v1533 = vshra.s32 %v1143, 16
  %v1534 = vcvt.s32.f32 %v1532
  %v1535 = vcvt.s32.f32 %v1533
  %1536 = vmin.xlane.f32.xlu0 %v1535
  %v1537 = vpop.xlane.xlu0 %1536
  %vm1538 = vcmp.eq.f32.partialorder %v1535, %v1537
  %v1539 = vsel %vm1538, %v1534, inf
  %1540 = vmin.xlane.f32.xlu0 %v1539
  %v1541 = vpop.xlane.xlu0 %1540
  %v1542 = vcvt.f32.s32 %v1541
  %v1543 = vcvt.f32.s32 %v1537
  %v1544 = vshll.u32 %v1543, 16
  %v1545 = vadd.s32 %v1544, %v1542
  %v1546 = vand.u32 %v1144, 65535
  %v1547 = vshra.s32 %v1144, 16
  %v1548 = vcvt.s32.f32 %v1546
  %v1549 = vcvt.s32.f32 %v1547
  %1550 = vmin.xlane.f32.xlu0 %v1549
  %v1551 = vpop.xlane.xlu0 %1550
  %vm1552 = vcmp.eq.f32.partialorder %v1549, %v1551
  %v1553 = vsel %vm1552, %v1548, inf
  %1554 = vmin.xlane.f32.xlu0 %v1553
  %v1555 = vpop.xlane.xlu0 %1554
  %v1556 = vcvt.f32.s32 %v1555
  %v1557 = vcvt.f32.s32 %v1551
  %v1558 = vshll.u32 %v1557, 16
  %v1559 = vadd.s32 %v1558, %v1556
  %v1560 = vand.u32 %v1145, 65535
  %v1561 = vshra.s32 %v1145, 16
  %v1562 = vcvt.s32.f32 %v1560
  %v1563 = vcvt.s32.f32 %v1561
  %1564 = vmin.xlane.f32.xlu0 %v1563
  %v1565 = vpop.xlane.xlu0 %1564
  %vm1566 = vcmp.eq.f32.partialorder %v1563, %v1565
  %v1567 = vsel %vm1566, %v1562, inf
  %1568 = vmin.xlane.f32.xlu0 %v1567
  %v1569 = vpop.xlane.xlu0 %1568
  %v1570 = vcvt.f32.s32 %v1569
  %v1571 = vcvt.f32.s32 %v1565
  %v1572 = vshll.u32 %v1571, 16
  %v1573 = vadd.s32 %v1572, %v1570
  %v1574 = vand.u32 %v1146, 65535
  %v1575 = vshra.s32 %v1146, 16
  %v1576 = vcvt.s32.f32 %v1574
  %v1577 = vcvt.s32.f32 %v1575
  %1578 = vmin.xlane.f32.xlu0 %v1577
  %v1579 = vpop.xlane.xlu0 %1578
  %vm1580 = vcmp.eq.f32.partialorder %v1577, %v1579
  %v1581 = vsel %vm1580, %v1576, inf
  %1582 = vmin.xlane.f32.xlu0 %v1581
  %v1583 = vpop.xlane.xlu0 %1582
  %v1584 = vcvt.f32.s32 %v1583
  %v1585 = vcvt.f32.s32 %v1579
  %v1586 = vshll.u32 %v1585, 16
  %v1587 = vadd.s32 %v1586, %v1584
  %v1588 = vand.u32 %v1147, 65535
  %v1589 = vshra.s32 %v1147, 16
  %v1590 = vcvt.s32.f32 %v1588
  %v1591 = vcvt.s32.f32 %v1589
  %1592 = vmin.xlane.f32.xlu0 %v1591
  %v1593 = vpop.xlane.xlu0 %1592
  %vm1594 = vcmp.eq.f32.partialorder %v1591, %v1593
  %v1595 = vsel %vm1594, %v1590, inf
  %1596 = vmin.xlane.f32.xlu0 %v1595
  %v1597 = vpop.xlane.xlu0 %1596
  %v1598 = vcvt.f32.s32 %v1597
  %v1599 = vcvt.f32.s32 %v1593
  %v1600 = vshll.u32 %v1599, 16
  %v1601 = vadd.s32 %v1600, %v1598
  %v1602 = vand.u32 %v1148, 65535
  %v1603 = vshra.s32 %v1148, 16
  %v1604 = vcvt.s32.f32 %v1602
  %v1605 = vcvt.s32.f32 %v1603
  %1606 = vmin.xlane.f32.xlu0 %v1605
  %v1607 = vpop.xlane.xlu0 %1606
  %vm1608 = vcmp.eq.f32.partialorder %v1605, %v1607
  %v1609 = vsel %vm1608, %v1604, inf
  %1610 = vmin.xlane.f32.xlu0 %v1609
  %v1611 = vpop.xlane.xlu0 %1610
  %v1612 = vcvt.f32.s32 %v1611
  %v1613 = vcvt.f32.s32 %v1607
  %v1614 = vshll.u32 %v1613, 16
  %v1615 = vadd.s32 %v1614, %v1612
  %v1616 = vand.u32 %v1149, 65535
  %v1617 = vshra.s32 %v1149, 16
  %v1618 = vcvt.s32.f32 %v1616
  %v1619 = vcvt.s32.f32 %v1617
  %1620 = vmin.xlane.f32.xlu0 %v1619
  %v1621 = vpop.xlane.xlu0 %1620
  %vm1622 = vcmp.eq.f32.partialorder %v1619, %v1621
  %v1623 = vsel %vm1622, %v1618, inf
  %1624 = vmin.xlane.f32.xlu0 %v1623
  %v1625 = vpop.xlane.xlu0 %1624
  %v1626 = vcvt.f32.s32 %v1625
  %v1627 = vcvt.f32.s32 %v1621
  %v1628 = vshll.u32 %v1627, 16
  %v1629 = vadd.s32 %v1628, %v1626
  %v1630 = vand.u32 %v1150, 65535
  %v1631 = vshra.s32 %v1150, 16
  %v1632 = vcvt.s32.f32 %v1630
  %v1633 = vcvt.s32.f32 %v1631
  %1634 = vmin.xlane.f32.xlu0 %v1633
  %v1635 = vpop.xlane.xlu0 %1634
  %vm1636 = vcmp.eq.f32.partialorder %v1633, %v1635
  %v1637 = vsel %vm1636, %v1632, inf
  %1638 = vmin.xlane.f32.xlu0 %v1637
  %v1639 = vpop.xlane.xlu0 %1638
  %v1640 = vcvt.f32.s32 %v1639
  %v1641 = vcvt.f32.s32 %v1635
  %v1642 = vshll.u32 %v1641, 16
  %v1643 = vadd.s32 %v1642, %v1640
  %v1644 = vand.u32 %v1151, 65535
  %v1645 = vshra.s32 %v1151, 16
  %v1646 = vcvt.s32.f32 %v1644
  %v1647 = vcvt.s32.f32 %v1645
  %1648 = vmin.xlane.f32.xlu0 %v1647
  %v1649 = vpop.xlane.xlu0 %1648
  %vm1650 = vcmp.eq.f32.partialorder %v1647, %v1649
  %v1651 = vsel %vm1650, %v1646, inf
  %1652 = vmin.xlane.f32.xlu0 %v1651
  %v1653 = vpop.xlane.xlu0 %1652
  %v1654 = vcvt.f32.s32 %v1653
  %v1655 = vcvt.f32.s32 %v1649
  %v1656 = vshll.u32 %v1655, 16
  %v1657 = vadd.s32 %v1656, %v1654
  %v1658 = vand.u32 %v1152, 65535
  %v1659 = vshra.s32 %v1152, 16
  %v1660 = vcvt.s32.f32 %v1658
  %v1661 = vcvt.s32.f32 %v1659
  %1662 = vmin.xlane.f32.xlu0 %v1661
  %v1663 = vpop.xlane.xlu0 %1662
  %vm1664 = vcmp.eq.f32.partialorder %v1661, %v1663
  %v1665 = vsel %vm1664, %v1660, inf
  %1666 = vmin.xlane.f32.xlu0 %v1665
  %v1667 = vpop.xlane.xlu0 %1666
  %v1668 = vcvt.f32.s32 %v1667
  %v1669 = vcvt.f32.s32 %v1663
  %v1670 = vshll.u32 %v1669, 16
  %v1671 = vadd.s32 %v1670, %v1668
  %v1672 = vand.u32 %v1153, 65535
  %v1673 = vshra.s32 %v1153, 16
  %v1674 = vcvt.s32.f32 %v1672
  %v1675 = vcvt.s32.f32 %v1673
  %1676 = vmin.xlane.f32.xlu0 %v1675
  %v1677 = vpop.xlane.xlu0 %1676
  %vm1678 = vcmp.eq.f32.partialorder %v1675, %v1677
  %v1679 = vsel %vm1678, %v1674, inf
  %1680 = vmin.xlane.f32.xlu0 %v1679
  %v1681 = vpop.xlane.xlu0 %1680
  %v1682 = vcvt.f32.s32 %v1681
  %v1683 = vcvt.f32.s32 %v1677
  %v1684 = vshll.u32 %v1683, 16
  %v1685 = vadd.s32 %v1684, %v1682
  %v1686 = vand.u32 %v1154, 65535
  %v1687 = vshra.s32 %v1154, 16
  %v1688 = vcvt.s32.f32 %v1686
  %v1689 = vcvt.s32.f32 %v1687
  %1690 = vmin.xlane.f32.xlu0 %v1689
  %v1691 = vpop.xlane.xlu0 %1690
  %vm1692 = vcmp.eq.f32.partialorder %v1689, %v1691
  %v1693 = vsel %vm1692, %v1688, inf
  %1694 = vmin.xlane.f32.xlu0 %v1693
  %v1695 = vpop.xlane.xlu0 %1694
  %v1696 = vcvt.f32.s32 %v1695
  %v1697 = vcvt.f32.s32 %v1691
  %v1698 = vshll.u32 %v1697, 16
  %v1699 = vadd.s32 %v1698, %v1696
  %v1700 = vand.u32 %v1155, 65535
  %v1701 = vshra.s32 %v1155, 16
  %v1702 = vcvt.s32.f32 %v1700
  %v1703 = vcvt.s32.f32 %v1701
  %1704 = vmin.xlane.f32.xlu0 %v1703
  %v1705 = vpop.xlane.xlu0 %1704
  %vm1706 = vcmp.eq.f32.partialorder %v1703, %v1705
  %v1707 = vsel %vm1706, %v1702, inf
  %1708 = vmin.xlane.f32.xlu0 %v1707
  %v1709 = vpop.xlane.xlu0 %1708
  %v1710 = vcvt.f32.s32 %v1709
  %v1711 = vcvt.f32.s32 %v1705
  %v1712 = vshll.u32 %v1711, 16
  %v1713 = vadd.s32 %v1712, %v1710
  %v1714 = vand.u32 %v1156, 65535
  %v1715 = vshra.s32 %v1156, 16
  %v1716 = vcvt.s32.f32 %v1714
  %v1717 = vcvt.s32.f32 %v1715
  %1718 = vmin.xlane.f32.xlu0 %v1717
  %v1719 = vpop.xlane.xlu0 %1718
  %vm1720 = vcmp.eq.f32.partialorder %v1717, %v1719
  %v1721 = vsel %vm1720, %v1716, inf
  %1722 = vmin.xlane.f32.xlu0 %v1721
  %v1723 = vpop.xlane.xlu0 %1722
  %v1724 = vcvt.f32.s32 %v1723
  %v1725 = vcvt.f32.s32 %v1719
  %v1726 = vshll.u32 %v1725, 16
  %v1727 = vadd.s32 %v1726, %v1724
  %v1728 = vand.u32 %v1157, 65535
  %v1729 = vshra.s32 %v1157, 16
  %v1730 = vcvt.s32.f32 %v1728
  %v1731 = vcvt.s32.f32 %v1729
  %1732 = vmin.xlane.f32.xlu0 %v1731
  %v1733 = vpop.xlane.xlu0 %1732
  %vm1734 = vcmp.eq.f32.partialorder %v1731, %v1733
  %v1735 = vsel %vm1734, %v1730, inf
  %1736 = vmin.xlane.f32.xlu0 %v1735
  %v1737 = vpop.xlane.xlu0 %1736
  %v1738 = vcvt.f32.s32 %v1737
  %v1739 = vcvt.f32.s32 %v1733
  %v1740 = vshll.u32 %v1739, 16
  %v1741 = vadd.s32 %v1740, %v1738
  %v1742 = vand.u32 %v1158, 65535
  %v1743 = vshra.s32 %v1158, 16
  %v1744 = vcvt.s32.f32 %v1742
  %v1745 = vcvt.s32.f32 %v1743
  %1746 = vmin.xlane.f32.xlu0 %v1745
  %v1747 = vpop.xlane.xlu0 %1746
  %vm1748 = vcmp.eq.f32.partialorder %v1745, %v1747
  %v1749 = vsel %vm1748, %v1744, inf
  %1750 = vmin.xlane.f32.xlu0 %v1749
  %v1751 = vpop.xlane.xlu0 %1750
  %v1752 = vcvt.f32.s32 %v1751
  %v1753 = vcvt.f32.s32 %v1747
  %v1754 = vshll.u32 %v1753, 16
  %v1755 = vadd.s32 %v1754, %v1752
  %v1756 = vand.u32 %v1159, 65535
  %v1757 = vshra.s32 %v1159, 16
  %v1758 = vcvt.s32.f32 %v1756
  %v1759 = vcvt.s32.f32 %v1757
  %1760 = vmin.xlane.f32.xlu0 %v1759
  %v1761 = vpop.xlane.xlu0 %1760
  %vm1762 = vcmp.eq.f32.partialorder %v1759, %v1761
  %v1763 = vsel %vm1762, %v1758, inf
  %1764 = vmin.xlane.f32.xlu0 %v1763
  %v1765 = vpop.xlane.xlu0 %1764
  %v1766 = vcvt.f32.s32 %v1765
  %v1767 = vcvt.f32.s32 %v1761
  %v1768 = vshll.u32 %v1767, 16
  %v1769 = vadd.s32 %v1768, %v1766
  %v1770 = vand.u32 %v1160, 65535
  %v1771 = vshra.s32 %v1160, 16
  %v1772 = vcvt.s32.f32 %v1770
  %v1773 = vcvt.s32.f32 %v1771
  %1774 = vmin.xlane.f32.xlu0 %v1773
  %v1775 = vpop.xlane.xlu0 %1774
  %vm1776 = vcmp.eq.f32.partialorder %v1773, %v1775
  %v1777 = vsel %vm1776, %v1772, inf
  %1778 = vmin.xlane.f32.xlu0 %v1777
  %v1779 = vpop.xlane.xlu0 %1778
  %v1780 = vcvt.f32.s32 %v1779
  %v1781 = vcvt.f32.s32 %v1775
  %v1782 = vshll.u32 %v1781, 16
  %v1783 = vadd.s32 %v1782, %v1780
  %v1784 = vand.u32 %v1161, 65535
  %v1785 = vshra.s32 %v1161, 16
  %v1786 = vcvt.s32.f32 %v1784
  %v1787 = vcvt.s32.f32 %v1785
  %1788 = vmin.xlane.f32.xlu0 %v1787
  %v1789 = vpop.xlane.xlu0 %1788
  %vm1790 = vcmp.eq.f32.partialorder %v1787, %v1789
  %v1791 = vsel %vm1790, %v1786, inf
  %1792 = vmin.xlane.f32.xlu0 %v1791
  %v1793 = vpop.xlane.xlu0 %1792
  %v1794 = vcvt.f32.s32 %v1793
  %v1795 = vcvt.f32.s32 %v1789
  %v1796 = vshll.u32 %v1795, 16
  %v1797 = vadd.s32 %v1796, %v1794
  %v1798 = vand.u32 %v1162, 65535
  %v1799 = vshra.s32 %v1162, 16
  %v1800 = vcvt.s32.f32 %v1798
  %v1801 = vcvt.s32.f32 %v1799
  %1802 = vmin.xlane.f32.xlu0 %v1801
  %v1803 = vpop.xlane.xlu0 %1802
  %vm1804 = vcmp.eq.f32.partialorder %v1801, %v1803
  %v1805 = vsel %vm1804, %v1800, inf
  %1806 = vmin.xlane.f32.xlu0 %v1805
  %v1807 = vpop.xlane.xlu0 %1806
  %v1808 = vcvt.f32.s32 %v1807
  %v1809 = vcvt.f32.s32 %v1803
  %v1810 = vshll.u32 %v1809, 16
  %v1811 = vadd.s32 %v1810, %v1808
  %v1812 = vand.u32 %v1163, 65535
  %v1813 = vshra.s32 %v1163, 16
  %v1814 = vcvt.s32.f32 %v1812
  %v1815 = vcvt.s32.f32 %v1813
  %1816 = vmin.xlane.f32.xlu0 %v1815
  %v1817 = vpop.xlane.xlu0 %1816
  %vm1818 = vcmp.eq.f32.partialorder %v1815, %v1817
  %v1819 = vsel %vm1818, %v1814, inf
  %1820 = vmin.xlane.f32.xlu0 %v1819
  %v1821 = vpop.xlane.xlu0 %1820
  %v1822 = vcvt.f32.s32 %v1821
  %v1823 = vcvt.f32.s32 %v1817
  %v1824 = vshll.u32 %v1823, 16
  %v1825 = vadd.s32 %v1824, %v1822
  %v1826 = vand.u32 %v1164, 65535
  %v1827 = vshra.s32 %v1164, 16
  %v1828 = vcvt.s32.f32 %v1826
  %v1829 = vcvt.s32.f32 %v1827
  %1830 = vmin.xlane.f32.xlu0 %v1829
  %v1831 = vpop.xlane.xlu0 %1830
  %vm1832 = vcmp.eq.f32.partialorder %v1829, %v1831
  %v1833 = vsel %vm1832, %v1828, inf
  %1834 = vmin.xlane.f32.xlu0 %v1833
  %v1835 = vpop.xlane.xlu0 %1834
  %v1836 = vcvt.f32.s32 %v1835
  %v1837 = vcvt.f32.s32 %v1831
  %v1838 = vshll.u32 %v1837, 16
  %v1839 = vadd.s32 %v1838, %v1836
  %v1840 = vand.u32 %v1165, 65535
  %v1841 = vshra.s32 %v1165, 16
  %v1842 = vcvt.s32.f32 %v1840
  %v1843 = vcvt.s32.f32 %v1841
  %1844 = vmin.xlane.f32.xlu0 %v1843
  %v1845 = vpop.xlane.xlu0 %1844
  %vm1846 = vcmp.eq.f32.partialorder %v1843, %v1845
  %v1847 = vsel %vm1846, %v1842, inf
  %1848 = vmin.xlane.f32.xlu0 %v1847
  %v1849 = vpop.xlane.xlu0 %1848
  %v1850 = vcvt.f32.s32 %v1849
  %v1851 = vcvt.f32.s32 %v1845
  %v1852 = vshll.u32 %v1851, 16
  %v1853 = vadd.s32 %v1852, %v1850
  %v1854 = vand.u32 %v1166, 65535
  %v1855 = vshra.s32 %v1166, 16
  %v1856 = vcvt.s32.f32 %v1854
  %v1857 = vcvt.s32.f32 %v1855
  %1858 = vmin.xlane.f32.xlu0 %v1857
  %v1859 = vpop.xlane.xlu0 %1858
  %vm1860 = vcmp.eq.f32.partialorder %v1857, %v1859
  %v1861 = vsel %vm1860, %v1856, inf
  %1862 = vmin.xlane.f32.xlu0 %v1861
  %v1863 = vpop.xlane.xlu0 %1862
  %v1864 = vcvt.f32.s32 %v1863
  %v1865 = vcvt.f32.s32 %v1859
  %v1866 = vshll.u32 %v1865, 16
  %v1867 = vadd.s32 %v1866, %v1864
  %v1868 = vand.u32 %v1167, 65535
  %v1869 = vshra.s32 %v1167, 16
  %v1870 = vcvt.s32.f32 %v1868
  %v1871 = vcvt.s32.f32 %v1869
  %1872 = vmin.xlane.f32.xlu0 %v1871
  %v1873 = vpop.xlane.xlu0 %1872
  %vm1874 = vcmp.eq.f32.partialorder %v1871, %v1873
  %v1875 = vsel %vm1874, %v1870, inf
  %1876 = vmin.xlane.f32.xlu0 %v1875
  %v1877 = vpop.xlane.xlu0 %1876
  %v1878 = vcvt.f32.s32 %v1877
  %v1879 = vcvt.f32.s32 %v1873
  %v1880 = vshll.u32 %v1879, 16
  %v1881 = vadd.s32 %v1880, %v1878
  %v1882 = vand.u32 %v1168, 65535
  %v1883 = vshra.s32 %v1168, 16
  %v1884 = vcvt.s32.f32 %v1882
  %v1885 = vcvt.s32.f32 %v1883
  %1886 = vmin.xlane.f32.xlu0 %v1885
  %v1887 = vpop.xlane.xlu0 %1886
  %vm1888 = vcmp.eq.f32.partialorder %v1885, %v1887
  %v1889 = vsel %vm1888, %v1884, inf
  %1890 = vmin.xlane.f32.xlu0 %v1889
  %v1891 = vpop.xlane.xlu0 %1890
  %v1892 = vcvt.f32.s32 %v1891
  %v1893 = vcvt.f32.s32 %v1887
  %v1894 = vshll.u32 %v1893, 16
  %v1895 = vadd.s32 %v1894, %v1892
  %v1896 = vand.u32 %v1169, 65535
  %v1897 = vshra.s32 %v1169, 16
  %v1898 = vcvt.s32.f32 %v1896
  %v1899 = vcvt.s32.f32 %v1897
  %1900 = vmin.xlane.f32.xlu0 %v1899
  %v1901 = vpop.xlane.xlu0 %1900
  %vm1902 = vcmp.eq.f32.partialorder %v1899, %v1901
  %v1903 = vsel %vm1902, %v1898, inf
  %1904 = vmin.xlane.f32.xlu0 %v1903
  %v1905 = vpop.xlane.xlu0 %1904
  %v1906 = vcvt.f32.s32 %v1905
  %v1907 = vcvt.f32.s32 %v1901
  %v1908 = vshll.u32 %v1907, 16
  %v1909 = vadd.s32 %v1908, %v1906
  %v1910 = vand.u32 %v1170, 65535
  %v1911 = vshra.s32 %v1170, 16
  %v1912 = vcvt.s32.f32 %v1910
  %v1913 = vcvt.s32.f32 %v1911
  %1914 = vmin.xlane.f32.xlu0 %v1913
  %v1915 = vpop.xlane.xlu0 %1914
  %vm1916 = vcmp.eq.f32.partialorder %v1913, %v1915
  %v1917 = vsel %vm1916, %v1912, inf
  %1918 = vmin.xlane.f32.xlu0 %v1917
  %v1919 = vpop.xlane.xlu0 %1918
  %v1920 = vcvt.f32.s32 %v1919
  %v1921 = vcvt.f32.s32 %v1915
  %v1922 = vshll.u32 %v1921, 16
  %v1923 = vadd.s32 %v1922, %v1920
  %v1924 = vand.u32 %v1171, 65535
  %v1925 = vshra.s32 %v1171, 16
  %v1926 = vcvt.s32.f32 %v1924
  %v1927 = vcvt.s32.f32 %v1925
  %1928 = vmin.xlane.f32.xlu0 %v1927
  %v1929 = vpop.xlane.xlu0 %1928
  %vm1930 = vcmp.eq.f32.partialorder %v1927, %v1929
  %v1931 = vsel %vm1930, %v1926, inf
  %1932 = vmin.xlane.f32.xlu0 %v1931
  %v1933 = vpop.xlane.xlu0 %1932
  %v1934 = vcvt.f32.s32 %v1933
  %v1935 = vcvt.f32.s32 %v1929
  %v1936 = vshll.u32 %v1935, 16
  %v1937 = vadd.s32 %v1936, %v1934
  %v1938 = vand.u32 %v1172, 65535
  %v1939 = vshra.s32 %v1172, 16
  %v1940 = vcvt.s32.f32 %v1938
  %v1941 = vcvt.s32.f32 %v1939
  %1942 = vmin.xlane.f32.xlu0 %v1941
  %v1943 = vpop.xlane.xlu0 %1942
  %vm1944 = vcmp.eq.f32.partialorder %v1941, %v1943
  %v1945 = vsel %vm1944, %v1940, inf
  %1946 = vmin.xlane.f32.xlu0 %v1945
  %v1947 = vpop.xlane.xlu0 %1946
  %v1948 = vcvt.f32.s32 %v1947
  %v1949 = vcvt.f32.s32 %v1943
  %v1950 = vshll.u32 %v1949, 16
  %v1951 = vadd.s32 %v1950, %v1948
  %v1952 = vand.u32 %v1173, 65535
  %v1953 = vshra.s32 %v1173, 16
  %v1954 = vcvt.s32.f32 %v1952
  %v1955 = vcvt.s32.f32 %v1953
  %1956 = vmin.xlane.f32.xlu0 %v1955
  %v1957 = vpop.xlane.xlu0 %1956
  %vm1958 = vcmp.eq.f32.partialorder %v1955, %v1957
  %v1959 = vsel %vm1958, %v1954, inf
  %1960 = vmin.xlane.f32.xlu0 %v1959
  %v1961 = vpop.xlane.xlu0 %1960
  %v1962 = vcvt.f32.s32 %v1961
  %v1963 = vcvt.f32.s32 %v1957
  %v1964 = vshll.u32 %v1963, 16
  %v1965 = vadd.s32 %v1964, %v1962
  %v1966 = vand.u32 %v1174, 65535
  %v1967 = vshra.s32 %v1174, 16
  %v1968 = vcvt.s32.f32 %v1966
  %v1969 = vcvt.s32.f32 %v1967
  %1970 = vmin.xlane.f32.xlu0 %v1969
  %v1971 = vpop.xlane.xlu0 %1970
  %vm1972 = vcmp.eq.f32.partialorder %v1969, %v1971
  %v1973 = vsel %vm1972, %v1968, inf
  %1974 = vmin.xlane.f32.xlu0 %v1973
  %v1975 = vpop.xlane.xlu0 %1974
  %v1976 = vcvt.f32.s32 %v1975
  %v1977 = vcvt.f32.s32 %v1971
  %v1978 = vshll.u32 %v1977, 16
  %v1979 = vadd.s32 %v1978, %v1976
  %v1980 = vand.u32 %v1175, 65535
  %v1981 = vshra.s32 %v1175, 16
  %v1982 = vcvt.s32.f32 %v1980
  %v1983 = vcvt.s32.f32 %v1981
  %1984 = vmin.xlane.f32.xlu0 %v1983
  %v1985 = vpop.xlane.xlu0 %1984
  %vm1986 = vcmp.eq.f32.partialorder %v1983, %v1985
  %v1987 = vsel %vm1986, %v1982, inf
  %1988 = vmin.xlane.f32.xlu0 %v1987
  %v1989 = vpop.xlane.xlu0 %1988
  %v1990 = vcvt.f32.s32 %v1989
  %v1991 = vcvt.f32.s32 %v1985
  %v1992 = vshll.u32 %v1991, 16
  %v1993 = vadd.s32 %v1992, %v1990
  %v1994 = vand.u32 %v1176, 65535
  %v1995 = vshra.s32 %v1176, 16
  %v1996 = vcvt.s32.f32 %v1994
  %v1997 = vcvt.s32.f32 %v1995
  %1998 = vmin.xlane.f32.xlu0 %v1997
  %v1999 = vpop.xlane.xlu0 %1998
  %vm2000 = vcmp.eq.f32.partialorder %v1997, %v1999
  %v2001 = vsel %vm2000, %v1996, inf
  %2002 = vmin.xlane.f32.xlu0 %v2001
  %v2003 = vpop.xlane.xlu0 %2002
  %v2004 = vcvt.f32.s32 %v2003
  %v2005 = vcvt.f32.s32 %v1999
  %v2006 = vshll.u32 %v2005, 16
  %v2007 = vadd.s32 %v2006, %v2004
  %v2008 = vand.u32 %v1177, 65535
  %v2009 = vshra.s32 %v1177, 16
  %v2010 = vcvt.s32.f32 %v2008
  %v2011 = vcvt.s32.f32 %v2009
  %2012 = vmin.xlane.f32.xlu0 %v2011
  %v2013 = vpop.xlane.xlu0 %2012
  %vm2014 = vcmp.eq.f32.partialorder %v2011, %v2013
  %v2015 = vsel %vm2014, %v2010, inf
  %2016 = vmin.xlane.f32.xlu0 %v2015
  %v2017 = vpop.xlane.xlu0 %2016
  %v2018 = vcvt.f32.s32 %v2017
  %v2019 = vcvt.f32.s32 %v2013
  %v2020 = vshll.u32 %v2019, 16
  %v2021 = vadd.s32 %v2020, %v2018
  %v2022 = vand.u32 %v1178, 65535
  %v2023 = vshra.s32 %v1178, 16
  %v2024 = vcvt.s32.f32 %v2022
  %v2025 = vcvt.s32.f32 %v2023
  %2026 = vmin.xlane.f32.xlu0 %v2025
  %v2027 = vpop.xlane.xlu0 %2026
  %vm2028 = vcmp.eq.f32.partialorder %v2025, %v2027
  %v2029 = vsel %vm2028, %v2024, inf
  %2030 = vmin.xlane.f32.xlu0 %v2029
  %v2031 = vpop.xlane.xlu0 %2030
  %v2032 = vcvt.f32.s32 %v2031
  %v2033 = vcvt.f32.s32 %v2027
  %v2034 = vshll.u32 %v2033, 16
  %v2035 = vadd.s32 %v2034, %v2032
  %v2036 = vand.u32 %v1179, 65535
  %v2037 = vshra.s32 %v1179, 16
  %v2038 = vcvt.s32.f32 %v2036
  %v2039 = vcvt.s32.f32 %v2037
  %2040 = vmin.xlane.f32.xlu0 %v2039
  %v2041 = vpop.xlane.xlu0 %2040
  %vm2042 = vcmp.eq.f32.partialorder %v2039, %v2041
  %v2043 = vsel %vm2042, %v2038, inf
  %2044 = vmin.xlane.f32.xlu0 %v2043
  %v2045 = vpop.xlane.xlu0 %2044
  %v2046 = vcvt.f32.s32 %v2045
  %v2047 = vcvt.f32.s32 %v2041
  %v2048 = vshll.u32 %v2047, 16
  %v2049 = vadd.s32 %v2048, %v2046
  %v2050 = vand.u32 %v1180, 65535
  %v2051 = vshra.s32 %v1180, 16
  %v2052 = vcvt.s32.f32 %v2050
  %v2053 = vcvt.s32.f32 %v2051
  %2054 = vmin.xlane.f32.xlu0 %v2053
  %v2055 = vpop.xlane.xlu0 %2054
  %vm2056 = vcmp.eq.f32.partialorder %v2053, %v2055
  %v2057 = vsel %vm2056, %v2052, inf
  %2058 = vmin.xlane.f32.xlu0 %v2057
  %v2059 = vpop.xlane.xlu0 %2058
  %v2060 = vcvt.f32.s32 %v2059
  %v2061 = vcvt.f32.s32 %v2055
  %v2062 = vshll.u32 %v2061, 16
  %v2063 = vadd.s32 %v2062, %v2060
  %v2064 = vand.u32 %v1181, 65535
  %v2065 = vshra.s32 %v1181, 16
  %v2066 = vcvt.s32.f32 %v2064
  %v2067 = vcvt.s32.f32 %v2065
  %2068 = vmin.xlane.f32.xlu0 %v2067
  %v2069 = vpop.xlane.xlu0 %2068
  %vm2070 = vcmp.eq.f32.partialorder %v2067, %v2069
  %v2071 = vsel %vm2070, %v2066, inf
  %2072 = vmin.xlane.f32.xlu0 %v2071
  %v2073 = vpop.xlane.xlu0 %2072
  %v2074 = vcvt.f32.s32 %v2073
  %v2075 = vcvt.f32.s32 %v2069
  %v2076 = vshll.u32 %v2075, 16
  %v2077 = vadd.s32 %v2076, %v2074
  %s2078 = smul.u32 0, 128
  %v2079 = vstv %s2078
  %v2080 = vadd.s32 %v1195, %v2079
  %v2081 = vadd.s32 %v1209, %v2079
  %v2082 = vadd.s32 %v1223, %v2079
  %v2083 = vadd.s32 %v1237, %v2079
  %v2084 = vadd.s32 %v1251, %v2079
  %v2085 = vadd.s32 %v1265, %v2079
  %v2086 = vadd.s32 %v1279, %v2079
  %v2087 = vadd.s32 %v1293, %v2079
  %v2088 = vadd.s32 %v1307, %v2079
  %v2089 = vadd.s32 %v1321, %v2079
  %v2090 = vadd.s32 %v1335, %v2079
  %v2091 = vadd.s32 %v1349, %v2079
  %v2092 = vadd.s32 %v1363, %v2079
  %v2093 = vadd.s32 %v1377, %v2079
  %v2094 = vadd.s32 %v1391, %v2079
  %v2095 = vadd.s32 %v1405, %v2079
  %v2096 = vadd.s32 %v1419, %v2079
  %v2097 = vadd.s32 %v1433, %v2079
  %v2098 = vadd.s32 %v1447, %v2079
  %v2099 = vadd.s32 %v1461, %v2079
  %v2100 = vadd.s32 %v1475, %v2079
  %v2101 = vadd.s32 %v1489, %v2079
  %v2102 = vadd.s32 %v1503, %v2079
  %v2103 = vadd.s32 %v1517, %v2079
  %v2104 = vadd.s32 %v1531, %v2079
  %v2105 = vadd.s32 %v1545, %v2079
  %v2106 = vadd.s32 %v1559, %v2079
  %v2107 = vadd.s32 %v1573, %v2079
  %v2108 = vadd.s32 %v1587, %v2079
  %v2109 = vadd.s32 %v1601, %v2079
  %v2110 = vadd.s32 %v1615, %v2079
  %v2111 = vadd.s32 %v1629, %v2079
  %v2112 = vadd.s32 %v1643, %v2079
  %v2113 = vadd.s32 %v1657, %v2079
  %v2114 = vadd.s32 %v1671, %v2079
  %v2115 = vadd.s32 %v1685, %v2079
  %v2116 = vadd.s32 %v1699, %v2079
  %v2117 = vadd.s32 %v1713, %v2079
  %v2118 = vadd.s32 %v1727, %v2079
  %v2119 = vadd.s32 %v1741, %v2079
  %v2120 = vadd.s32 %v1755, %v2079
  %v2121 = vadd.s32 %v1769, %v2079
  %v2122 = vadd.s32 %v1783, %v2079
  %v2123 = vadd.s32 %v1797, %v2079
  %v2124 = vadd.s32 %v1811, %v2079
  %v2125 = vadd.s32 %v1825, %v2079
  %v2126 = vadd.s32 %v1839, %v2079
  %v2127 = vadd.s32 %v1853, %v2079
  %v2128 = vadd.s32 %v1867, %v2079
  %v2129 = vadd.s32 %v1881, %v2079
  %v2130 = vadd.s32 %v1895, %v2079
  %v2131 = vadd.s32 %v1909, %v2079
  %v2132 = vadd.s32 %v1923, %v2079
  %v2133 = vadd.s32 %v1937, %v2079
  %v2134 = vadd.s32 %v1951, %v2079
  %v2135 = vadd.s32 %v1965, %v2079
  %v2136 = vadd.s32 %v1979, %v2079
  %v2137 = vadd.s32 %v1993, %v2079
  %v2138 = vadd.s32 %v2007, %v2079
  %v2139 = vadd.s32 %v2021, %v2079
  %v2140 = vadd.s32 %v2035, %v2079
  %v2141 = vadd.s32 %v2049, %v2079
  %v2142 = vadd.s32 %v2063, %v2079
  %v2143 = vadd.s32 %v2077, %v2079
  %v2144 = vld [vmem:[#allocation2] sm:$0xff]
  %v2145 = vld [vmem:[#allocation2 + $0x8] sm:$0xff]
  %v2146 = vld [vmem:[#allocation2 + $0x10] sm:$0xff]
  %v2147 = vld [vmem:[#allocation2 + $0x18] sm:$0xff]
  %v2148 = vld [vmem:[#allocation2 + $0x20] sm:$0xff]
  %v2149 = vld [vmem:[#allocation2 + $0x28] sm:$0xff]
  %v2150 = vld [vmem:[#allocation2 + $0x30] sm:$0xff]
  %v2151 = vld [vmem:[#allocation2 + $0x38] sm:$0xff]
  %v2152 = vld [vmem:[#allocation2 + $0x40] sm:$0xff]
  %v2153 = vld [vmem:[#allocation2 + $0x48] sm:$0xff]
  %v2154 = vld [vmem:[#allocation2 + $0x50] sm:$0xff]
  %v2155 = vld [vmem:[#allocation2 + $0x58] sm:$0xff]
  %v2156 = vld [vmem:[#allocation2 + $0x60] sm:$0xff]
  %v2157 = vld [vmem:[#allocation2 + $0x68] sm:$0xff]
  %v2158 = vld [vmem:[#allocation2 + $0x70] sm:$0xff]
  %v2159 = vld [vmem:[#allocation2 + $0x78] sm:$0xff]
  %v2160 = vld [vmem:[#allocation2 + $0x80] sm:$0xff]
  %v2161 = vld [vmem:[#allocation2 + $0x88] sm:$0xff]
  %v2162 = vld [vmem:[#allocation2 + $0x90] sm:$0xff]
  %v2163 = vld [vmem:[#allocation2 + $0x98] sm:$0xff]
  %v2164 = vld [vmem:[#allocation2 + $0xa0] sm:$0xff]
  %v2165 = vld [vmem:[#allocation2 + $0xa8] sm:$0xff]
  %v2166 = vld [vmem:[#allocation2 + $0xb0] sm:$0xff]
  %v2167 = vld [vmem:[#allocation2 + $0xb8] sm:$0xff]
  %v2168 = vld [vmem:[#allocation2 + $0xc0] sm:$0xff]
  %v2169 = vld [vmem:[#allocation2 + $0xc8] sm:$0xff]
  %v2170 = vld [vmem:[#allocation2 + $0xd0] sm:$0xff]
  %v2171 = vld [vmem:[#allocation2 + $0xd8] sm:$0xff]
  %v2172 = vld [vmem:[#allocation2 + $0xe0] sm:$0xff]
  %v2173 = vld [vmem:[#allocation2 + $0xe8] sm:$0xff]
  %v2174 = vld [vmem:[#allocation2 + $0xf0] sm:$0xff]
  %v2175 = vld [vmem:[#allocation2 + $0xf8] sm:$0xff]
  %v2176 = vld [vmem:[#allocation2 + $0x100] sm:$0xff]
  %v2177 = vld [vmem:[#allocation2 + $0x108] sm:$0xff]
  %v2178 = vld [vmem:[#allocation2 + $0x110] sm:$0xff]
  %v2179 = vld [vmem:[#allocation2 + $0x118] sm:$0xff]
  %v2180 = vld [vmem:[#allocation2 + $0x120] sm:$0xff]
  %v2181 = vld [vmem:[#allocation2 + $0x128] sm:$0xff]
  %v2182 = vld [vmem:[#allocation2 + $0x130] sm:$0xff]
  %v2183 = vld [vmem:[#allocation2 + $0x138] sm:$0xff]
  %v2184 = vld [vmem:[#allocation2 + $0x140] sm:$0xff]
  %v2185 = vld [vmem:[#allocation2 + $0x148] sm:$0xff]
  %v2186 = vld [vmem:[#allocation2 + $0x150] sm:$0xff]
  %v2187 = vld [vmem:[#allocation2 + $0x158] sm:$0xff]
  %v2188 = vld [vmem:[#allocation2 + $0x160] sm:$0xff]
  %v2189 = vld [vmem:[#allocation2 + $0x168] sm:$0xff]
  %v2190 = vld [vmem:[#allocation2 + $0x170] sm:$0xff]
  %v2191 = vld [vmem:[#allocation2 + $0x178] sm:$0xff]
  %v2192 = vld [vmem:[#allocation2 + $0x180] sm:$0xff]
  %v2193 = vld [vmem:[#allocation2 + $0x188] sm:$0xff]
  %v2194 = vld [vmem:[#allocation2 + $0x190] sm:$0xff]
  %v2195 = vld [vmem:[#allocation2 + $0x198] sm:$0xff]
  %v2196 = vld [vmem:[#allocation2 + $0x1a0] sm:$0xff]
  %v2197 = vld [vmem:[#allocation2 + $0x1a8] sm:$0xff]
  %v2198 = vld [vmem:[#allocation2 + $0x1b0] sm:$0xff]
  %v2199 = vld [vmem:[#allocation2 + $0x1b8] sm:$0xff]
  %v2200 = vld [vmem:[#allocation2 + $0x1c0] sm:$0xff]
  %v2201 = vld [vmem:[#allocation2 + $0x1c8] sm:$0xff]
  %v2202 = vld [vmem:[#allocation2 + $0x1d0] sm:$0xff]
  %v2203 = vld [vmem:[#allocation2 + $0x1d8] sm:$0xff]
  %v2204 = vld [vmem:[#allocation2 + $0x1e0] sm:$0xff]
  %v2205 = vld [vmem:[#allocation2 + $0x1e8] sm:$0xff]
  %v2206 = vld [vmem:[#allocation2 + $0x1f0] sm:$0xff]
  %v2207 = vld [vmem:[#allocation2 + $0x1f8] sm:$0xff]
  %vm2208 = vcmp.gt.f32.partialorder %v925, %v2144
  %vm2209 = vcmp.gt.f32.partialorder %v927, %v2145
  %vm2210 = vcmp.gt.f32.partialorder %v929, %v2146
  %vm2211 = vcmp.gt.f32.partialorder %v931, %v2147
  %vm2212 = vcmp.gt.f32.partialorder %v933, %v2148
  %vm2213 = vcmp.gt.f32.partialorder %v935, %v2149
  %vm2214 = vcmp.gt.f32.partialorder %v937, %v2150
  %vm2215 = vcmp.gt.f32.partialorder %v939, %v2151
  %vm2216 = vcmp.gt.f32.partialorder %v941, %v2152
  %vm2217 = vcmp.gt.f32.partialorder %v943, %v2153
  %vm2218 = vcmp.gt.f32.partialorder %v945, %v2154
  %vm2219 = vcmp.gt.f32.partialorder %v947, %v2155
  %vm2220 = vcmp.gt.f32.partialorder %v949, %v2156
  %vm2221 = vcmp.gt.f32.partialorder %v951, %v2157
  %vm2222 = vcmp.gt.f32.partialorder %v953, %v2158
  %vm2223 = vcmp.gt.f32.partialorder %v955, %v2159
  %vm2224 = vcmp.gt.f32.partialorder %v957, %v2160
  %vm2225 = vcmp.gt.f32.partialorder %v959, %v2161
  %vm2226 = vcmp.gt.f32.partialorder %v961, %v2162
  %vm2227 = vcmp.gt.f32.partialorder %v963, %v2163
  %vm2228 = vcmp.gt.f32.partialorder %v965, %v2164
  %vm2229 = vcmp.gt.f32.partialorder %v967, %v2165
  %vm2230 = vcmp.gt.f32.partialorder %v969, %v2166
  %vm2231 = vcmp.gt.f32.partialorder %v971, %v2167
  %vm2232 = vcmp.gt.f32.partialorder %v973, %v2168
  %vm2233 = vcmp.gt.f32.partialorder %v975, %v2169
  %vm2234 = vcmp.gt.f32.partialorder %v977, %v2170
  %vm2235 = vcmp.gt.f32.partialorder %v979, %v2171
  %vm2236 = vcmp.gt.f32.partialorder %v981, %v2172
  %vm2237 = vcmp.gt.f32.partialorder %v983, %v2173
  %vm2238 = vcmp.gt.f32.partialorder %v985, %v2174
  %vm2239 = vcmp.gt.f32.partialorder %v987, %v2175
  %vm2240 = vcmp.gt.f32.partialorder %v989, %v2176
  %vm2241 = vcmp.gt.f32.partialorder %v991, %v2177
  %vm2242 = vcmp.gt.f32.partialorder %v993, %v2178
  %vm2243 = vcmp.gt.f32.partialorder %v995, %v2179
  %vm2244 = vcmp.gt.f32.partialorder %v997, %v2180
  %vm2245 = vcmp.gt.f32.partialorder %v999, %v2181
  %vm2246 = vcmp.gt.f32.partialorder %v1001, %v2182
  %vm2247 = vcmp.gt.f32.partialorder %v1003, %v2183
  %vm2248 = vcmp.gt.f32.partialorder %v1005, %v2184
  %vm2249 = vcmp.gt.f32.partialorder %v1007, %v2185
  %vm2250 = vcmp.gt.f32.partialorder %v1009, %v2186
  %vm2251 = vcmp.gt.f32.partialorder %v1011, %v2187
  %vm2252 = vcmp.gt.f32.partialorder %v1013, %v2188
  %vm2253 = vcmp.gt.f32.partialorder %v1015, %v2189
  %vm2254 = vcmp.gt.f32.partialorder %v1017, %v2190
  %vm2255 = vcmp.gt.f32.partialorder %v1019, %v2191
  %vm2256 = vcmp.gt.f32.partialorder %v1021, %v2192
  %vm2257 = vcmp.gt.f32.partialorder %v1023, %v2193
  %vm2258 = vcmp.gt.f32.partialorder %v1025, %v2194
  %vm2259 = vcmp.gt.f32.partialorder %v1027, %v2195
  %vm2260 = vcmp.gt.f32.partialorder %v1029, %v2196
  %vm2261 = vcmp.gt.f32.partialorder %v1031, %v2197
  %vm2262 = vcmp.gt.f32.partialorder %v1033, %v2198
  %vm2263 = vcmp.gt.f32.partialorder %v1035, %v2199
  %vm2264 = vcmp.gt.f32.partialorder %v1037, %v2200
  %vm2265 = vcmp.gt.f32.partialorder %v1039, %v2201
  %vm2266 = vcmp.gt.f32.partialorder %v1041, %v2202
  %vm2267 = vcmp.gt.f32.partialorder %v1043, %v2203
  %vm2268 = vcmp.gt.f32.partialorder %v1045, %v2204
  %vm2269 = vcmp.gt.f32.partialorder %v1047, %v2205
  %vm2270 = vcmp.gt.f32.partialorder %v1049, %v2206
  %vm2271 = vcmp.gt.f32.partialorder %v1051, %v2207
  %v2272 = vsel %vm2208, %v925, %v2144
  %v2273 = vsel %vm2209, %v927, %v2145
  %v2274 = vsel %vm2210, %v929, %v2146
  %v2275 = vsel %vm2211, %v931, %v2147
  %v2276 = vsel %vm2212, %v933, %v2148
  %v2277 = vsel %vm2213, %v935, %v2149
  %v2278 = vsel %vm2214, %v937, %v2150
  %v2279 = vsel %vm2215, %v939, %v2151
  %v2280 = vsel %vm2216, %v941, %v2152
  %v2281 = vsel %vm2217, %v943, %v2153
  %v2282 = vsel %vm2218, %v945, %v2154
  %v2283 = vsel %vm2219, %v947, %v2155
  %v2284 = vsel %vm2220, %v949, %v2156
  %v2285 = vsel %vm2221, %v951, %v2157
  %v2286 = vsel %vm2222, %v953, %v2158
  %v2287 = vsel %vm2223, %v955, %v2159
  %v2288 = vsel %vm2224, %v957, %v2160
  %v2289 = vsel %vm2225, %v959, %v2161
  %v2290 = vsel %vm2226, %v961, %v2162
  %v2291 = vsel %vm2227, %v963, %v2163
  %v2292 = vsel %vm2228, %v965, %v2164
  %v2293 = vsel %vm2229, %v967, %v2165
  %v2294 = vsel %vm2230, %v969, %v2166
  %v2295 = vsel %vm2231, %v971, %v2167
  %v2296 = vsel %vm2232, %v973, %v2168
  %v2297 = vsel %vm2233, %v975, %v2169
  %v2298 = vsel %vm2234, %v977, %v2170
  %v2299 = vsel %vm2235, %v979, %v2171
  %v2300 = vsel %vm2236, %v981, %v2172
  %v2301 = vsel %vm2237, %v983, %v2173
  %v2302 = vsel %vm2238, %v985, %v2174
  %v2303 = vsel %vm2239, %v987, %v2175
  %v2304 = vsel %vm2240, %v989, %v2176
  %v2305 = vsel %vm2241, %v991, %v2177
  %v2306 = vsel %vm2242, %v993, %v2178
  %v2307 = vsel %vm2243, %v995, %v2179
  %v2308 = vsel %vm2244, %v997, %v2180
  %v2309 = vsel %vm2245, %v999, %v2181
  %v2310 = vsel %vm2246, %v1001, %v2182
  %v2311 = vsel %vm2247, %v1003, %v2183
  %v2312 = vsel %vm2248, %v1005, %v2184
  %v2313 = vsel %vm2249, %v1007, %v2185
  %v2314 = vsel %vm2250, %v1009, %v2186
  %v2315 = vsel %vm2251, %v1011, %v2187
  %v2316 = vsel %vm2252, %v1013, %v2188
  %v2317 = vsel %vm2253, %v1015, %v2189
  %v2318 = vsel %vm2254, %v1017, %v2190
  %v2319 = vsel %vm2255, %v1019, %v2191
  %v2320 = vsel %vm2256, %v1021, %v2192
  %v2321 = vsel %vm2257, %v1023, %v2193
  %v2322 = vsel %vm2258, %v1025, %v2194
  %v2323 = vsel %vm2259, %v1027, %v2195
  %v2324 = vsel %vm2260, %v1029, %v2196
  %v2325 = vsel %vm2261, %v1031, %v2197
  %v2326 = vsel %vm2262, %v1033, %v2198
  %v2327 = vsel %vm2263, %v1035, %v2199
  %v2328 = vsel %vm2264, %v1037, %v2200
  %v2329 = vsel %vm2265, %v1039, %v2201
  %v2330 = vsel %vm2266, %v1041, %v2202
  %v2331 = vsel %vm2267, %v1043, %v2203
  %v2332 = vsel %vm2268, %v1045, %v2204
  %v2333 = vsel %vm2269, %v1047, %v2205
  %v2334 = vsel %vm2270, %v1049, %v2206
  %v2335 = vsel %vm2271, %v1051, %v2207
  %vm2336 = vcmask 7168
  %2337 = vst.msk [vmem:[#allocation2] sm:$0xff] %vm2336, %v2272
  %2338 = vst.msk [vmem:[#allocation2 + $0x8] sm:$0xff] %vm2336, %v2273
  %2339 = vst.msk [vmem:[#allocation2 + $0x10] sm:$0xff] %vm2336, %v2274
  %2340 = vst.msk [vmem:[#allocation2 + $0x18] sm:$0xff] %vm2336, %v2275
  %2341 = vst.msk [vmem:[#allocation2 + $0x20] sm:$0xff] %vm2336, %v2276
  %2342 = vst.msk [vmem:[#allocation2 + $0x28] sm:$0xff] %vm2336, %v2277
  %2343 = vst.msk [vmem:[#allocation2 + $0x30] sm:$0xff] %vm2336, %v2278
  %2344 = vst.msk [vmem:[#allocation2 + $0x38] sm:$0xff] %vm2336, %v2279
  %2345 = vst.msk [vmem:[#allocation2 + $0x40] sm:$0xff] %vm2336, %v2280
  %2346 = vst.msk [vmem:[#allocation2 + $0x48] sm:$0xff] %vm2336, %v2281
  %2347 = vst.msk [vmem:[#allocation2 + $0x50] sm:$0xff] %vm2336, %v2282
  %2348 = vst.msk [vmem:[#allocation2 + $0x58] sm:$0xff] %vm2336, %v2283
  %2349 = vst.msk [vmem:[#allocation2 + $0x60] sm:$0xff] %vm2336, %v2284
  %2350 = vst.msk [vmem:[#allocation2 + $0x68] sm:$0xff] %vm2336, %v2285
  %2351 = vst.msk [vmem:[#allocation2 + $0x70] sm:$0xff] %vm2336, %v2286
  %2352 = vst.msk [vmem:[#allocation2 + $0x78] sm:$0xff] %vm2336, %v2287
  %2353 = vst.msk [vmem:[#allocation2 + $0x80] sm:$0xff] %vm2336, %v2288
  %2354 = vst.msk [vmem:[#allocation2 + $0x88] sm:$0xff] %vm2336, %v2289
  %2355 = vst.msk [vmem:[#allocation2 + $0x90] sm:$0xff] %vm2336, %v2290
  %2356 = vst.msk [vmem:[#allocation2 + $0x98] sm:$0xff] %vm2336, %v2291
  %2357 = vst.msk [vmem:[#allocation2 + $0xa0] sm:$0xff] %vm2336, %v2292
  %2358 = vst.msk [vmem:[#allocation2 + $0xa8] sm:$0xff] %vm2336, %v2293
  %2359 = vst.msk [vmem:[#allocation2 + $0xb0] sm:$0xff] %vm2336, %v2294
  %2360 = vst.msk [vmem:[#allocation2 + $0xb8] sm:$0xff] %vm2336, %v2295
  %2361 = vst.msk [vmem:[#allocation2 + $0xc0] sm:$0xff] %vm2336, %v2296
  %2362 = vst.msk [vmem:[#allocation2 + $0xc8] sm:$0xff] %vm2336, %v2297
  %2363 = vst.msk [vmem:[#allocation2 + $0xd0] sm:$0xff] %vm2336, %v2298
  %2364 = vst.msk [vmem:[#allocation2 + $0xd8] sm:$0xff] %vm2336, %v2299
  %2365 = vst.msk [vmem:[#allocation2 + $0xe0] sm:$0xff] %vm2336, %v2300
  %2366 = vst.msk [vmem:[#allocation2 + $0xe8] sm:$0xff] %vm2336, %v2301
  %2367 = vst.msk [vmem:[#allocation2 + $0xf0] sm:$0xff] %vm2336, %v2302
  %2368 = vst.msk [vmem:[#allocation2 + $0xf8] sm:$0xff] %vm2336, %v2303
  %2369 = vst.msk [vmem:[#allocation2 + $0x100] sm:$0xff] %vm2336, %v2304
  %2370 = vst.msk [vmem:[#allocation2 + $0x108] sm:$0xff] %vm2336, %v2305
  %2371 = vst.msk [vmem:[#allocation2 + $0x110] sm:$0xff] %vm2336, %v2306
  %2372 = vst.msk [vmem:[#allocation2 + $0x118] sm:$0xff] %vm2336, %v2307
  %2373 = vst.msk [vmem:[#allocation2 + $0x120] sm:$0xff] %vm2336, %v2308
  %2374 = vst.msk [vmem:[#allocation2 + $0x128] sm:$0xff] %vm2336, %v2309
  %2375 = vst.msk [vmem:[#allocation2 + $0x130] sm:$0xff] %vm2336, %v2310
  %2376 = vst.msk [vmem:[#allocation2 + $0x138] sm:$0xff] %vm2336, %v2311
  %2377 = vst.msk [vmem:[#allocation2 + $0x140] sm:$0xff] %vm2336, %v2312
  %2378 = vst.msk [vmem:[#allocation2 + $0x148] sm:$0xff] %vm2336, %v2313
  %2379 = vst.msk [vmem:[#allocation2 + $0x150] sm:$0xff] %vm2336, %v2314
  %2380 = vst.msk [vmem:[#allocation2 + $0x158] sm:$0xff] %vm2336, %v2315
  %2381 = vst.msk [vmem:[#allocation2 + $0x160] sm:$0xff] %vm2336, %v2316
  %2382 = vst.msk [vmem:[#allocation2 + $0x168] sm:$0xff] %vm2336, %v2317
  %2383 = vst.msk [vmem:[#allocation2 + $0x170] sm:$0xff] %vm2336, %v2318
  %2384 = vst.msk [vmem:[#allocation2 + $0x178] sm:$0xff] %vm2336, %v2319
  %2385 = vst.msk [vmem:[#allocation2 + $0x180] sm:$0xff] %vm2336, %v2320
  %2386 = vst.msk [vmem:[#allocation2 + $0x188] sm:$0xff] %vm2336, %v2321
  %2387 = vst.msk [vmem:[#allocation2 + $0x190] sm:$0xff] %vm2336, %v2322
  %2388 = vst.msk [vmem:[#allocation2 + $0x198] sm:$0xff] %vm2336, %v2323
  %2389 = vst.msk [vmem:[#allocation2 + $0x1a0] sm:$0xff] %vm2336, %v2324
  %2390 = vst.msk [vmem:[#allocation2 + $0x1a8] sm:$0xff] %vm2336, %v2325
  %2391 = vst.msk [vmem:[#allocation2 + $0x1b0] sm:$0xff] %vm2336, %v2326
  %2392 = vst.msk [vmem:[#allocation2 + $0x1b8] sm:$0xff] %vm2336, %v2327
  %2393 = vst.msk [vmem:[#allocation2 + $0x1c0] sm:$0xff] %vm2336, %v2328
  %2394 = vst.msk [vmem:[#allocation2 + $0x1c8] sm:$0xff] %vm2336, %v2329
  %2395 = vst.msk [vmem:[#allocation2 + $0x1d0] sm:$0xff] %vm2336, %v2330
  %2396 = vst.msk [vmem:[#allocation2 + $0x1d8] sm:$0xff] %vm2336, %v2331
  %2397 = vst.msk [vmem:[#allocation2 + $0x1e0] sm:$0xff] %vm2336, %v2332
  %2398 = vst.msk [vmem:[#allocation2 + $0x1e8] sm:$0xff] %vm2336, %v2333
  %2399 = vst.msk [vmem:[#allocation2 + $0x1f0] sm:$0xff] %vm2336, %v2334
  %2400 = vst.msk [vmem:[#allocation2 + $0x1f8] sm:$0xff] %vm2336, %v2335
  %v2401 = vld [vmem:[#allocation3] sm:$0xff]
  %v2402 = vld [vmem:[#allocation3 + $0x8] sm:$0xff]
  %v2403 = vld [vmem:[#allocation3 + $0x10] sm:$0xff]
  %v2404 = vld [vmem:[#allocation3 + $0x18] sm:$0xff]
  %v2405 = vld [vmem:[#allocation3 + $0x20] sm:$0xff]
  %v2406 = vld [vmem:[#allocation3 + $0x28] sm:$0xff]
  %v2407 = vld [vmem:[#allocation3 + $0x30] sm:$0xff]
  %v2408 = vld [vmem:[#allocation3 + $0x38] sm:$0xff]
  %v2409 = vld [vmem:[#allocation3 + $0x40] sm:$0xff]
  %v2410 = vld [vmem:[#allocation3 + $0x48] sm:$0xff]
  %v2411 = vld [vmem:[#allocation3 + $0x50] sm:$0xff]
  %v2412 = vld [vmem:[#allocation3 + $0x58] sm:$0xff]
  %v2413 = vld [vmem:[#allocation3 + $0x60] sm:$0xff]
  %v2414 = vld [vmem:[#allocation3 + $0x68] sm:$0xff]
  %v2415 = vld [vmem:[#allocation3 + $0x70] sm:$0xff]
  %v2416 = vld [vmem:[#allocation3 + $0x78] sm:$0xff]
  %v2417 = vld [vmem:[#allocation3 + $0x80] sm:$0xff]
  %v2418 = vld [vmem:[#allocation3 + $0x88] sm:$0xff]
  %v2419 = vld [vmem:[#allocation3 + $0x90] sm:$0xff]
  %v2420 = vld [vmem:[#allocation3 + $0x98] sm:$0xff]
  %v2421 = vld [vmem:[#allocation3 + $0xa0] sm:$0xff]
  %v2422 = vld [vmem:[#allocation3 + $0xa8] sm:$0xff]
  %v2423 = vld [vmem:[#allocation3 + $0xb0] sm:$0xff]
  %v2424 = vld [vmem:[#allocation3 + $0xb8] sm:$0xff]
  %v2425 = vld [vmem:[#allocation3 + $0xc0] sm:$0xff]
  %v2426 = vld [vmem:[#allocation3 + $0xc8] sm:$0xff]
  %v2427 = vld [vmem:[#allocation3 + $0xd0] sm:$0xff]
  %v2428 = vld [vmem:[#allocation3 + $0xd8] sm:$0xff]
  %v2429 = vld [vmem:[#allocation3 + $0xe0] sm:$0xff]
  %v2430 = vld [vmem:[#allocation3 + $0xe8] sm:$0xff]
  %v2431 = vld [vmem:[#allocation3 + $0xf0] sm:$0xff]
  %v2432 = vld [vmem:[#allocation3 + $0xf8] sm:$0xff]
  %v2433 = vld [vmem:[#allocation3 + $0x100] sm:$0xff]
  %v2434 = vld [vmem:[#allocation3 + $0x108] sm:$0xff]
  %v2435 = vld [vmem:[#allocation3 + $0x110] sm:$0xff]
  %v2436 = vld [vmem:[#allocation3 + $0x118] sm:$0xff]
  %v2437 = vld [vmem:[#allocation3 + $0x120] sm:$0xff]
  %v2438 = vld [vmem:[#allocation3 + $0x128] sm:$0xff]
  %v2439 = vld [vmem:[#allocation3 + $0x130] sm:$0xff]
  %v2440 = vld [vmem:[#allocation3 + $0x138] sm:$0xff]
  %v2441 = vld [vmem:[#allocation3 + $0x140] sm:$0xff]
  %v2442 = vld [vmem:[#allocation3 + $0x148] sm:$0xff]
  %v2443 = vld [vmem:[#allocation3 + $0x150] sm:$0xff]
  %v2444 = vld [vmem:[#allocation3 + $0x158] sm:$0xff]
  %v2445 = vld [vmem:[#allocation3 + $0x160] sm:$0xff]
  %v2446 = vld [vmem:[#allocation3 + $0x168] sm:$0xff]
  %v2447 = vld [vmem:[#allocation3 + $0x170] sm:$0xff]
  %v2448 = vld [vmem:[#allocation3 + $0x178] sm:$0xff]
  %v2449 = vld [vmem:[#allocation3 + $0x180] sm:$0xff]
  %v2450 = vld [vmem:[#allocation3 + $0x188] sm:$0xff]
  %v2451 = vld [vmem:[#allocation3 + $0x190] sm:$0xff]
  %v2452 = vld [vmem:[#allocation3 + $0x198] sm:$0xff]
  %v2453 = vld [vmem:[#allocation3 + $0x1a0] sm:$0xff]
  %v2454 = vld [vmem:[#allocation3 + $0x1a8] sm:$0xff]
  %v2455 = vld [vmem:[#allocation3 + $0x1b0] sm:$0xff]
  %v2456 = vld [vmem:[#allocation3 + $0x1b8] sm:$0xff]
  %v2457 = vld [vmem:[#allocation3 + $0x1c0] sm:$0xff]
  %v2458 = vld [vmem:[#allocation3 + $0x1c8] sm:$0xff]
  %v2459 = vld [vmem:[#allocation3 + $0x1d0] sm:$0xff]
  %v2460 = vld [vmem:[#allocation3 + $0x1d8] sm:$0xff]
  %v2461 = vld [vmem:[#allocation3 + $0x1e0] sm:$0xff]
  %v2462 = vld [vmem:[#allocation3 + $0x1e8] sm:$0xff]
  %v2463 = vld [vmem:[#allocation3 + $0x1f0] sm:$0xff]
  %v2464 = vld [vmem:[#allocation3 + $0x1f8] sm:$0xff]
  %v2465 = vsel %vm2208, %v2080, %v2401
  %v2466 = vsel %vm2209, %v2081, %v2402
  %v2467 = vsel %vm2210, %v2082, %v2403
  %v2468 = vsel %vm2211, %v2083, %v2404
  %v2469 = vsel %vm2212, %v2084, %v2405
  %v2470 = vsel %vm2213, %v2085, %v2406
  %v2471 = vsel %vm2214, %v2086, %v2407
  %v2472 = vsel %vm2215, %v2087, %v2408
  %v2473 = vsel %vm2216, %v2088, %v2409
  %v2474 = vsel %vm2217, %v2089, %v2410
  %v2475 = vsel %vm2218, %v2090, %v2411
  %v2476 = vsel %vm2219, %v2091, %v2412
  %v2477 = vsel %vm2220, %v2092, %v2413
  %v2478 = vsel %vm2221, %v2093, %v2414
  %v2479 = vsel %vm2222, %v2094, %v2415
  %v2480 = vsel %vm2223, %v2095, %v2416
  %v2481 = vsel %vm2224, %v2096, %v2417
  %v2482 = vsel %vm2225, %v2097, %v2418
  %v2483 = vsel %vm2226, %v2098, %v2419
  %v2484 = vsel %vm2227, %v2099, %v2420
  %v2485 = vsel %vm2228, %v2100, %v2421
  %v2486 = vsel %vm2229, %v2101, %v2422
  %v2487 = vsel %vm2230, %v2102, %v2423
  %v2488 = vsel %vm2231, %v2103, %v2424
  %v2489 = vsel %vm2232, %v2104, %v2425
  %v2490 = vsel %vm2233, %v2105, %v2426
  %v2491 = vsel %vm2234, %v2106, %v2427
  %v2492 = vsel %vm2235, %v2107, %v2428
  %v2493 = vsel %vm2236, %v2108, %v2429
  %v2494 = vsel %vm2237, %v2109, %v2430
  %v2495 = vsel %vm2238, %v2110, %v2431
  %v2496 = vsel %vm2239, %v2111, %v2432
  %v2497 = vsel %vm2240, %v2112, %v2433
  %v2498 = vsel %vm2241, %v2113, %v2434
  %v2499 = vsel %vm2242, %v2114, %v2435
  %v2500 = vsel %vm2243, %v2115, %v2436
  %v2501 = vsel %vm2244, %v2116, %v2437
  %v2502 = vsel %vm2245, %v2117, %v2438
  %v2503 = vsel %vm2246, %v2118, %v2439
  %v2504 = vsel %vm2247, %v2119, %v2440
  %v2505 = vsel %vm2248, %v2120, %v2441
  %v2506 = vsel %vm2249, %v2121, %v2442
  %v2507 = vsel %vm2250, %v2122, %v2443
  %v2508 = vsel %vm2251, %v2123, %v2444
  %v2509 = vsel %vm2252, %v2124, %v2445
  %v2510 = vsel %vm2253, %v2125, %v2446
  %v2511 = vsel %vm2254, %v2126, %v2447
  %v2512 = vsel %vm2255, %v2127, %v2448
  %v2513 = vsel %vm2256, %v2128, %v2449
  %v2514 = vsel %vm2257, %v2129, %v2450
  %v2515 = vsel %vm2258, %v2130, %v2451
  %v2516 = vsel %vm2259, %v2131, %v2452
  %v2517 = vsel %vm2260, %v2132, %v2453
  %v2518 = vsel %vm2261, %v2133, %v2454
  %v2519 = vsel %vm2262, %v2134, %v2455
  %v2520 = vsel %vm2263, %v2135, %v2456
  %v2521 = vsel %vm2264, %v2136, %v2457
  %v2522 = vsel %vm2265, %v2137, %v2458
  %v2523 = vsel %vm2266, %v2138, %v2459
  %v2524 = vsel %vm2267, %v2139, %v2460
  %v2525 = vsel %vm2268, %v2140, %v2461
  %v2526 = vsel %vm2269, %v2141, %v2462
  %v2527 = vsel %vm2270, %v2142, %v2463
  %v2528 = vsel %vm2271, %v2143, %v2464
  %2529 = vst.msk [vmem:[#allocation3] sm:$0xff] %vm2336, %v2465
  %2530 = vst.msk [vmem:[#allocation3 + $0x8] sm:$0xff] %vm2336, %v2466
  %2531 = vst.msk [vmem:[#allocation3 + $0x10] sm:$0xff] %vm2336, %v2467
  %2532 = vst.msk [vmem:[#allocation3 + $0x18] sm:$0xff] %vm2336, %v2468
  %2533 = vst.msk [vmem:[#allocation3 + $0x20] sm:$0xff] %vm2336, %v2469
  %2534 = vst.msk [vmem:[#allocation3 + $0x28] sm:$0xff] %vm2336, %v2470
  %2535 = vst.msk [vmem:[#allocation3 + $0x30] sm:$0xff] %vm2336, %v2471
  %2536 = vst.msk [vmem:[#allocation3 + $0x38] sm:$0xff] %vm2336, %v2472
  %2537 = vst.msk [vmem:[#allocation3 + $0x40] sm:$0xff] %vm2336, %v2473
  %2538 = vst.msk [vmem:[#allocation3 + $0x48] sm:$0xff] %vm2336, %v2474
  %2539 = vst.msk [vmem:[#allocation3 + $0x50] sm:$0xff] %vm2336, %v2475
  %2540 = vst.msk [vmem:[#allocation3 + $0x58] sm:$0xff] %vm2336, %v2476
  %2541 = vst.msk [vmem:[#allocation3 + $0x60] sm:$0xff] %vm2336, %v2477
  %2542 = vst.msk [vmem:[#allocation3 + $0x68] sm:$0xff] %vm2336, %v2478
  %2543 = vst.msk [vmem:[#allocation3 + $0x70] sm:$0xff] %vm2336, %v2479
  %2544 = vst.msk [vmem:[#allocation3 + $0x78] sm:$0xff] %vm2336, %v2480
  %2545 = vst.msk [vmem:[#allocation3 + $0x80] sm:$0xff] %vm2336, %v2481
  %2546 = vst.msk [vmem:[#allocation3 + $0x88] sm:$0xff] %vm2336, %v2482
  %2547 = vst.msk [vmem:[#allocation3 + $0x90] sm:$0xff] %vm2336, %v2483
  %2548 = vst.msk [vmem:[#allocation3 + $0x98] sm:$0xff] %vm2336, %v2484
  %2549 = vst.msk [vmem:[#allocation3 + $0xa0] sm:$0xff] %vm2336, %v2485
  %2550 = vst.msk [vmem:[#allocation3 + $0xa8] sm:$0xff] %vm2336, %v2486
  %2551 = vst.msk [vmem:[#allocation3 + $0xb0] sm:$0xff] %vm2336, %v2487
  %2552 = vst.msk [vmem:[#allocation3 + $0xb8] sm:$0xff] %vm2336, %v2488
  %2553 = vst.msk [vmem:[#allocation3 + $0xc0] sm:$0xff] %vm2336, %v2489
  %2554 = vst.msk [vmem:[#allocation3 + $0xc8] sm:$0xff] %vm2336, %v2490
  %2555 = vst.msk [vmem:[#allocation3 + $0xd0] sm:$0xff] %vm2336, %v2491
  %2556 = vst.msk [vmem:[#allocation3 + $0xd8] sm:$0xff] %vm2336, %v2492
  %2557 = vst.msk [vmem:[#allocation3 + $0xe0] sm:$0xff] %vm2336, %v2493
  %2558 = vst.msk [vmem:[#allocation3 + $0xe8] sm:$0xff] %vm2336, %v2494
  %2559 = vst.msk [vmem:[#allocation3 + $0xf0] sm:$0xff] %vm2336, %v2495
  %2560 = vst.msk [vmem:[#allocation3 + $0xf8] sm:$0xff] %vm2336, %v2496
  %2561 = vst.msk [vmem:[#allocation3 + $0x100] sm:$0xff] %vm2336, %v2497
  %2562 = vst.msk [vmem:[#allocation3 + $0x108] sm:$0xff] %vm2336, %v2498
  %2563 = vst.msk [vmem:[#allocation3 + $0x110] sm:$0xff] %vm2336, %v2499
  %2564 = vst.msk [vmem:[#allocation3 + $0x118] sm:$0xff] %vm2336, %v2500
  %2565 = vst.msk [vmem:[#allocation3 + $0x120] sm:$0xff] %vm2336, %v2501
  %2566 = vst.msk [vmem:[#allocation3 + $0x128] sm:$0xff] %vm2336, %v2502
  %2567 = vst.msk [vmem:[#allocation3 + $0x130] sm:$0xff] %vm2336, %v2503
  %2568 = vst.msk [vmem:[#allocation3 + $0x138] sm:$0xff] %vm2336, %v2504
  %2569 = vst.msk [vmem:[#allocation3 + $0x140] sm:$0xff] %vm2336, %v2505
  %2570 = vst.msk [vmem:[#allocation3 + $0x148] sm:$0xff] %vm2336, %v2506
  %2571 = vst.msk [vmem:[#allocation3 + $0x150] sm:$0xff] %vm2336, %v2507
  %2572 = vst.msk [vmem:[#allocation3 + $0x158] sm:$0xff] %vm2336, %v2508
  %2573 = vst.msk [vmem:[#allocation3 + $0x160] sm:$0xff] %vm2336, %v2509
  %2574 = vst.msk [vmem:[#allocation3 + $0x168] sm:$0xff] %vm2336, %v2510
  %2575 = vst.msk [vmem:[#allocation3 + $0x170] sm:$0xff] %vm2336, %v2511
  %2576 = vst.msk [vmem:[#allocation3 + $0x178] sm:$0xff] %vm2336, %v2512
  %2577 = vst.msk [vmem:[#allocation3 + $0x180] sm:$0xff] %vm2336, %v2513
  %2578 = vst.msk [vmem:[#allocation3 + $0x188] sm:$0xff] %vm2336, %v2514
  %2579 = vst.msk [vmem:[#allocation3 + $0x190] sm:$0xff] %vm2336, %v2515
  %2580 = vst.msk [vmem:[#allocation3 + $0x198] sm:$0xff] %vm2336, %v2516
  %2581 = vst.msk [vmem:[#allocation3 + $0x1a0] sm:$0xff] %vm2336, %v2517
  %2582 = vst.msk [vmem:[#allocation3 + $0x1a8] sm:$0xff] %vm2336, %v2518
  %2583 = vst.msk [vmem:[#allocation3 + $0x1b0] sm:$0xff] %vm2336, %v2519
  %2584 = vst.msk [vmem:[#allocation3 + $0x1b8] sm:$0xff] %vm2336, %v2520
  %2585 = vst.msk [vmem:[#allocation3 + $0x1c0] sm:$0xff] %vm2336, %v2521
  %2586 = vst.msk [vmem:[#allocation3 + $0x1c8] sm:$0xff] %vm2336, %v2522
  %2587 = vst.msk [vmem:[#allocation3 + $0x1d0] sm:$0xff] %vm2336, %v2523
  %2588 = vst.msk [vmem:[#allocation3 + $0x1d8] sm:$0xff] %vm2336, %v2524
  %2589 = vst.msk [vmem:[#allocation3 + $0x1e0] sm:$0xff] %vm2336, %v2525
  %2590 = vst.msk [vmem:[#allocation3 + $0x1e8] sm:$0xff] %vm2336, %v2526
  %2591 = vst.msk [vmem:[#allocation3 + $0x1f0] sm:$0xff] %vm2336, %v2527
  %2592 = vst.msk [vmem:[#allocation3 + $0x1f8] sm:$0xff] %vm2336, %v2528
  // Predicated region
  $region18: #{vector_quantizer_forward.1} parent=0 // pred_check
    %p2593 = pneg %p14
  $region19: #{vector_quantizer_forward.1} parent=0 // pred_check_branch
    %2595 = sbr.rel (%p2593) target = $region21
  $region20: #{vector_quantizer_forward.1} parent=0 // pred_region
    %v2596 = vld [vmem:[#allocation3] sm:$0xff]
    %v2597 = vld [vmem:[#allocation3 + $0x8] sm:$0xff]
    %v2598 = vld [vmem:[#allocation3 + $0x10] sm:$0xff]
    %v2599 = vld [vmem:[#allocation3 + $0x18] sm:$0xff]
    %v2600 = vld [vmem:[#allocation3 + $0x20] sm:$0xff]
    %v2601 = vld [vmem:[#allocation3 + $0x28] sm:$0xff]
    %v2602 = vld [vmem:[#allocation3 + $0x30] sm:$0xff]
    %v2603 = vld [vmem:[#allocation3 + $0x38] sm:$0xff]
    %v2604 = vld [vmem:[#allocation3 + $0x40] sm:$0xff]
    %v2605 = vld [vmem:[#allocation3 + $0x48] sm:$0xff]
    %v2606 = vld [vmem:[#allocation3 + $0x50] sm:$0xff]
    %v2607 = vld [vmem:[#allocation3 + $0x58] sm:$0xff]
    %v2608 = vld [vmem:[#allocation3 + $0x60] sm:$0xff]
    %v2609 = vld [vmem:[#allocation3 + $0x68] sm:$0xff]
    %v2610 = vld [vmem:[#allocation3 + $0x70] sm:$0xff]
    %v2611 = vld [vmem:[#allocation3 + $0x78] sm:$0xff]
    %v2612 = vld [vmem:[#allocation3 + $0x80] sm:$0xff]
    %v2613 = vld [vmem:[#allocation3 + $0x88] sm:$0xff]
    %v2614 = vld [vmem:[#allocation3 + $0x90] sm:$0xff]
    %v2615 = vld [vmem:[#allocation3 + $0x98] sm:$0xff]
    %v2616 = vld [vmem:[#allocation3 + $0xa0] sm:$0xff]
    %v2617 = vld [vmem:[#allocation3 + $0xa8] sm:$0xff]
    %v2618 = vld [vmem:[#allocation3 + $0xb0] sm:$0xff]
    %v2619 = vld [vmem:[#allocation3 + $0xb8] sm:$0xff]
    %v2620 = vld [vmem:[#allocation3 + $0xc0] sm:$0xff]
    %v2621 = vld [vmem:[#allocation3 + $0xc8] sm:$0xff]
    %v2622 = vld [vmem:[#allocation3 + $0xd0] sm:$0xff]
    %v2623 = vld [vmem:[#allocation3 + $0xd8] sm:$0xff]
    %v2624 = vld [vmem:[#allocation3 + $0xe0] sm:$0xff]
    %v2625 = vld [vmem:[#allocation3 + $0xe8] sm:$0xff]
    %v2626 = vld [vmem:[#allocation3 + $0xf0] sm:$0xff]
    %v2627 = vld [vmem:[#allocation3 + $0xf8] sm:$0xff]
    %v2628 = vld [vmem:[#allocation3 + $0x100] sm:$0xff]
    %v2629 = vld [vmem:[#allocation3 + $0x108] sm:$0xff]
    %v2630 = vld [vmem:[#allocation3 + $0x110] sm:$0xff]
    %v2631 = vld [vmem:[#allocation3 + $0x118] sm:$0xff]
    %v2632 = vld [vmem:[#allocation3 + $0x120] sm:$0xff]
    %v2633 = vld [vmem:[#allocation3 + $0x128] sm:$0xff]
    %v2634 = vld [vmem:[#allocation3 + $0x130] sm:$0xff]
    %v2635 = vld [vmem:[#allocation3 + $0x138] sm:$0xff]
    %v2636 = vld [vmem:[#allocation3 + $0x140] sm:$0xff]
    %v2637 = vld [vmem:[#allocation3 + $0x148] sm:$0xff]
    %v2638 = vld [vmem:[#allocation3 + $0x150] sm:$0xff]
    %v2639 = vld [vmem:[#allocation3 + $0x158] sm:$0xff]
    %v2640 = vld [vmem:[#allocation3 + $0x160] sm:$0xff]
    %v2641 = vld [vmem:[#allocation3 + $0x168] sm:$0xff]
    %v2642 = vld [vmem:[#allocation3 + $0x170] sm:$0xff]
    %v2643 = vld [vmem:[#allocation3 + $0x178] sm:$0xff]
    %v2644 = vld [vmem:[#allocation3 + $0x180] sm:$0xff]
    %v2645 = vld [vmem:[#allocation3 + $0x188] sm:$0xff]
    %v2646 = vld [vmem:[#allocation3 + $0x190] sm:$0xff]
    %v2647 = vld [vmem:[#allocation3 + $0x198] sm:$0xff]
    %v2648 = vld [vmem:[#allocation3 + $0x1a0] sm:$0xff]
    %v2649 = vld [vmem:[#allocation3 + $0x1a8] sm:$0xff]
    %v2650 = vld [vmem:[#allocation3 + $0x1b0] sm:$0xff]
    %v2651 = vld [vmem:[#allocation3 + $0x1b8] sm:$0xff]
    %v2652 = vld [vmem:[#allocation3 + $0x1c0] sm:$0xff]
    %v2653 = vld [vmem:[#allocation3 + $0x1c8] sm:$0xff]
    %v2654 = vld [vmem:[#allocation3 + $0x1d0] sm:$0xff]
    %v2655 = vld [vmem:[#allocation3 + $0x1d8] sm:$0xff]
    %v2656 = vld [vmem:[#allocation3 + $0x1e0] sm:$0xff]
    %v2657 = vld [vmem:[#allocation3 + $0x1e8] sm:$0xff]
    %v2658 = vld [vmem:[#allocation3 + $0x1f0] sm:$0xff]
    %v2659 = vld [vmem:[#allocation3 + $0x1f8] sm:$0xff]
    %2660 = vst.msk [vmem:[%s3] sm:$0xff] %vm2336, %v2596
    %2661 = vst.msk [vmem:[%s3 + $0x8] sm:$0xff] %vm2336, %v2597
    %2662 = vst.msk [vmem:[%s3 + $0x10] sm:$0xff] %vm2336, %v2598
    %2663 = vst.msk [vmem:[%s3 + $0x18] sm:$0xff] %vm2336, %v2599
    %2664 = vst.msk [vmem:[%s3 + $0x20] sm:$0xff] %vm2336, %v2600
    %2665 = vst.msk [vmem:[%s3 + $0x28] sm:$0xff] %vm2336, %v2601
    %2666 = vst.msk [vmem:[%s3 + $0x30] sm:$0xff] %vm2336, %v2602
    %2667 = vst.msk [vmem:[%s3 + $0x38] sm:$0xff] %vm2336, %v2603
    %2668 = vst.msk [vmem:[%s3 + $0x40] sm:$0xff] %vm2336, %v2604
    %2669 = vst.msk [vmem:[%s3 + $0x48] sm:$0xff] %vm2336, %v2605
    %2670 = vst.msk [vmem:[%s3 + $0x50] sm:$0xff] %vm2336, %v2606
    %2671 = vst.msk [vmem:[%s3 + $0x58] sm:$0xff] %vm2336, %v2607
    %2672 = vst.msk [vmem:[%s3 + $0x60] sm:$0xff] %vm2336, %v2608
    %2673 = vst.msk [vmem:[%s3 + $0x68] sm:$0xff] %vm2336, %v2609
    %2674 = vst.msk [vmem:[%s3 + $0x70] sm:$0xff] %vm2336, %v2610
    %2675 = vst.msk [vmem:[%s3 + $0x78] sm:$0xff] %vm2336, %v2611
    %2676 = vst.msk [vmem:[%s3 + $0x80] sm:$0xff] %vm2336, %v2612
    %2677 = vst.msk [vmem:[%s3 + $0x88] sm:$0xff] %vm2336, %v2613
    %2678 = vst.msk [vmem:[%s3 + $0x90] sm:$0xff] %vm2336, %v2614
    %2679 = vst.msk [vmem:[%s3 + $0x98] sm:$0xff] %vm2336, %v2615
    %2680 = vst.msk [vmem:[%s3 + $0xa0] sm:$0xff] %vm2336, %v2616
    %2681 = vst.msk [vmem:[%s3 + $0xa8] sm:$0xff] %vm2336, %v2617
    %2682 = vst.msk [vmem:[%s3 + $0xb0] sm:$0xff] %vm2336, %v2618
    %2683 = vst.msk [vmem:[%s3 + $0xb8] sm:$0xff] %vm2336, %v2619
    %2684 = vst.msk [vmem:[%s3 + $0xc0] sm:$0xff] %vm2336, %v2620
    %2685 = vst.msk [vmem:[%s3 + $0xc8] sm:$0xff] %vm2336, %v2621
    %2686 = vst.msk [vmem:[%s3 + $0xd0] sm:$0xff] %vm2336, %v2622
    %2687 = vst.msk [vmem:[%s3 + $0xd8] sm:$0xff] %vm2336, %v2623
    %2688 = vst.msk [vmem:[%s3 + $0xe0] sm:$0xff] %vm2336, %v2624
    %2689 = vst.msk [vmem:[%s3 + $0xe8] sm:$0xff] %vm2336, %v2625
    %2690 = vst.msk [vmem:[%s3 + $0xf0] sm:$0xff] %vm2336, %v2626
    %2691 = vst.msk [vmem:[%s3 + $0xf8] sm:$0xff] %vm2336, %v2627
    %2692 = vst.msk [vmem:[%s3 + $0x100] sm:$0xff] %vm2336, %v2628
    %2693 = vst.msk [vmem:[%s3 + $0x108] sm:$0xff] %vm2336, %v2629
    %2694 = vst.msk [vmem:[%s3 + $0x110] sm:$0xff] %vm2336, %v2630
    %2695 = vst.msk [vmem:[%s3 + $0x118] sm:$0xff] %vm2336, %v2631
    %2696 = vst.msk [vmem:[%s3 + $0x120] sm:$0xff] %vm2336, %v2632
    %2697 = vst.msk [vmem:[%s3 + $0x128] sm:$0xff] %vm2336, %v2633
    %2698 = vst.msk [vmem:[%s3 + $0x130] sm:$0xff] %vm2336, %v2634
    %2699 = vst.msk [vmem:[%s3 + $0x138] sm:$0xff] %vm2336, %v2635
    %2700 = vst.msk [vmem:[%s3 + $0x140] sm:$0xff] %vm2336, %v2636
    %2701 = vst.msk [vmem:[%s3 + $0x148] sm:$0xff] %vm2336, %v2637
    %2702 = vst.msk [vmem:[%s3 + $0x150] sm:$0xff] %vm2336, %v2638
    %2703 = vst.msk [vmem:[%s3 + $0x158] sm:$0xff] %vm2336, %v2639
    %2704 = vst.msk [vmem:[%s3 + $0x160] sm:$0xff] %vm2336, %v2640
    %2705 = vst.msk [vmem:[%s3 + $0x168] sm:$0xff] %vm2336, %v2641
    %2706 = vst.msk [vmem:[%s3 + $0x170] sm:$0xff] %vm2336, %v2642
    %2707 = vst.msk [vmem:[%s3 + $0x178] sm:$0xff] %vm2336, %v2643
    %2708 = vst.msk [vmem:[%s3 + $0x180] sm:$0xff] %vm2336, %v2644
    %2709 = vst.msk [vmem:[%s3 + $0x188] sm:$0xff] %vm2336, %v2645
    %2710 = vst.msk [vmem:[%s3 + $0x190] sm:$0xff] %vm2336, %v2646
    %2711 = vst.msk [vmem:[%s3 + $0x198] sm:$0xff] %vm2336, %v2647
    %2712 = vst.msk [vmem:[%s3 + $0x1a0] sm:$0xff] %vm2336, %v2648
    %2713 = vst.msk [vmem:[%s3 + $0x1a8] sm:$0xff] %vm2336, %v2649
    %2714 = vst.msk [vmem:[%s3 + $0x1b0] sm:$0xff] %vm2336, %v2650
    %2715 = vst.msk [vmem:[%s3 + $0x1b8] sm:$0xff] %vm2336, %v2651
    %2716 = vst.msk [vmem:[%s3 + $0x1c0] sm:$0xff] %vm2336, %v2652
    %2717 = vst.msk [vmem:[%s3 + $0x1c8] sm:$0xff] %vm2336, %v2653
    %2718 = vst.msk [vmem:[%s3 + $0x1d0] sm:$0xff] %vm2336, %v2654
    %2719 = vst.msk [vmem:[%s3 + $0x1d8] sm:$0xff] %vm2336, %v2655
    %2720 = vst.msk [vmem:[%s3 + $0x1e0] sm:$0xff] %vm2336, %v2656
    %2721 = vst.msk [vmem:[%s3 + $0x1e8] sm:$0xff] %vm2336, %v2657
    %2722 = vst.msk [vmem:[%s3 + $0x1f0] sm:$0xff] %vm2336, %v2658
    %2723 = vst.msk [vmem:[%s3 + $0x1f8] sm:$0xff] %vm2336, %v2659
  $region21: #{vector_quantizer_forward.1} parent=0 // pred_fallthru
    _
  // Predicated region
  $region22: #{vector_quantizer_forward.1} parent=0 // pred_check
    _
  $region23: #{vector_quantizer_forward.1} parent=0 // pred_check_branch
    %2725 = sbr.rel (0) target = $region25
  $region24: #{vector_quantizer_forward.1} parent=0 // pred_region
    _
  $region25: #{vector_quantizer_forward.1} parent=0 // pred_fallthru
    _
  // Predicated region
  $region26: #{vector_quantizer_forward.1} parent=0 // pred_check
    _
  $region27: #{vector_quantizer_forward.1} parent=0 // pred_check_branch
    %2727 = sbr.rel (0) target = $region29
  $region28: #{vector_quantizer_forward.1} parent=0 // pred_region
    _
  $region29: #{vector_quantizer_forward.1} parent=0 // pred_fallthru
    _

</llo_original>
